<compile_context>
chip_gen: v7x
topology: tpu7x:2x2x1
jax: 0.10.0
libtpu: 0.0.40
codegen_flags: <defaults>
</compile_context>

<pallas_src>
import jax
import jax.numpy as jnp
from jax.experimental import pallas as pl
from jax.experimental.pallas import tpu as pltpu


def _round_up(n, m):
    return (n + m - 1) // m * m


def _vmem_capacity_bytes():
    """Physical VMEM per TensorCore; conservative fallback (v7x: 64 MiB) if query fails."""
    try:
        cap = getattr(pltpu.get_tpu_info(), "vmem_capacity_bytes", None)
        if cap:
            return int(cap)
    except Exception:
        pass
    return 64 << 20


def _footprint_bytes(tb, tf, Z, Lp):
    """Estimated VMEM footprint (double-buffered pipelined blocks + scratch + temps)."""
    return (
        2 * tb * tf * 4                # x tile (f32; cast to bf16 in-kernel)
        + 2 * tf * Z * 2               # w1 tile (bf16), streamed over F
        + 2 * (Z * Z + Z * Lp) * 2     # w2, w3 (bf16, resident; default 2-deep buffering)
        + 2 * (Z + Z + Lp) * 4         # biases (f32)
        + 2 * (tb * Lp + tb * Z) * 4   # output blocks (padded logits, normed)
        + tb * Z * 4                   # f32 accumulator scratch
        + tb * tf * 2                  # in-kernel bf16 copy of the x tile
        + 4 * tb * Z * 4               # epilogue temporaries headroom
    )


def _choose_tf(F, Z, Lp, tb, tf_target, vmem_budget):
    """Pick tf as a multiple of 128 so the last reduction tile is nearly full and the
    footprint fits the VMEM budget (increase the step count until it does)."""
    Fp128 = _round_up(F, 128)
    nk = max(1, pl.cdiv(Fp128, max(_round_up(tf_target, 128), 128)))
    while True:
        tf = _round_up(pl.cdiv(Fp128, nk), 128)
        if tf <= 128 or _footprint_bytes(tb, tf, Z, Lp) <= vmem_budget:
            return tf
        nk += 1


def t_forward_kernel(x_ref, w1_ref, b1_ref, w2_ref, b2_ref, w3_ref, b3_ref,
                     logits_ref, normed_ref, acc_ref):
    k = pl.program_id(1)

    @pl.when(k == 0)
    def _init():
        acc_ref[...] = jnp.zeros_like(acc_ref)

    # Streamed TFIDF.linear: x cast to bf16 in-kernel (VPU), bf16 x bf16 on the MXU,
    # f32 accumulation in VMEM scratch.
    acc_ref[...] += jnp.dot(x_ref[...].astype(jnp.bfloat16), w1_ref[...],
                            preferred_element_type=jnp.float32)

    @pl.when(k == pl.num_programs(1) - 1)
    def _epilogue():
        # TFIDF.linear bias (dropout p=0.5 is identity in eval).
        t1 = acc_ref[...] + b1_ref[...]                                     # (tb, Z) f32
        # tfidf_linear (dropout p=0.1 identity). bf16 MXU matmul, f32 accumulate + bias.
        t2 = jnp.dot(t1.astype(jnp.bfloat16), w2_ref[...],
                     preferred_element_type=jnp.float32) + b2_ref[...]      # (tb, Z) f32
        # label head on dropout(tfidf) == tfidf in eval. Output lane-padded to Lp.
        logits_ref[...] = jnp.dot(t2.astype(jnp.bfloat16), w3_ref[...],
                                  preferred_element_type=jnp.float32) + b3_ref[...]
        # F.normalize(t2, dim=1): t2 / max(||t2||, 1e-12) == t2 * rsqrt(max(ssq, 1e-24))
        ssq = jnp.sum(t2 * t2, axis=1, keepdims=True)                       # (tb, 1)
        normed_ref[...] = t2 * jax.lax.rsqrt(jnp.maximum(ssq, 1e-24))


def prepare_t_params(w1, b1, w2, b2, w3, b3, *, tb=256, tf=4096):
    """One-time (model-load) weight preparation.

    Weights are pre-transposed ((in, out)); biases (1, out). Casts the big matmul
    operands to bf16, zero-pads F (reduction) and L (lane-dense label head), and
    fixes the reduction tile tf so none of this work recurs per forward call.
    """
    F, Z = w1.shape
    L = w3.shape[1]
    Lp = _round_up(L, 128)                         # lane-dense label head
    tb = _round_up(max(16, tb), 16)                # bf16 packs 2 rows / sublane
    vmem_budget = int(0.8 * _vmem_capacity_bytes())
    tf = _choose_tf(F, Z, Lp, tb, tf, vmem_budget)
    Fp = _round_up(F, tf)                          # near-minimal F padding by construction

    w1p = jnp.pad(w1.astype(jnp.bfloat16), ((0, Fp - F), (0, 0)))
    w2b = w2.astype(jnp.bfloat16)
    w3p = jnp.pad(w3.astype(jnp.bfloat16), ((0, 0), (0, Lp - L)))
    b3p = jnp.pad(b3, ((0, 0), (0, Lp - L)))

    return dict(w1=w1p, b1=b1, w2=w2b, b2=b2, w3=w3p, b3=b3p,
                F=F, Fp=Fp, Z=Z, L=L, Lp=Lp, tf=tf, tb=tb)


def t_forward(x, params, *, tb=None):
    """Pallas forward of T. `params` comes from prepare_t_params."""
    B, F = x.shape
    assert F == params["F"], (F, params["F"])
    Z, L, Lp = params["Z"], params["L"], params["Lp"]
    Fp, tf = params["Fp"], params["tf"]

    tb = params["tb"] if tb is None else tb
    tb = _round_up(min(tb, _round_up(B, 16)), 16)  # multiple of 16, clamped to batch
    Bp = _round_up(B, tb)

    xp = x.astype(jnp.float32)                     # no bf16 cast pass on x (done in-kernel)
    if (Bp, Fp) != (B, F):
        xp = jnp.pad(xp, ((0, Bp - B), (0, Fp - F)))

    # Generation-aware VMEM limit: headroom above the real footprint, capped by the
    # physical capacity, never clamped below the footprint itself.
    footprint = _footprint_bytes(tb, tf, Z, Lp)
    cap = max(_vmem_capacity_bytes() - (8 << 20), footprint)
    vmem_limit = int(min(footprint + (8 << 20), cap))

    grid = (Bp // tb, Fp // tf)                    # (batch tiles [parallel], F tiles [reduction])

    logits_pad, normed_pad = pl.pallas_call(
        t_forward_kernel,
        out_shape=(
            jax.ShapeDtypeStruct((Bp, Lp), jnp.float32),   # supcon_fea_cls_logits (padded)
            jax.ShapeDtypeStruct((Bp, Z), jnp.float32),    # supcon_fea_cls
        ),
        grid_spec=pltpu.PrefetchScalarGridSpec(
            num_scalar_prefetch=0,
            grid=grid,
            in_specs=[
                pl.BlockSpec((tb, tf), lambda i, k: (i, k)),   # x tile (f32)
                pl.BlockSpec((tf, Z), lambda i, k: (k, 0)),    # w1 tile (bf16, streamed over F)
                pl.BlockSpec((1, Z), lambda i, k: (0, 0)),     # b1 (resident)
                pl.BlockSpec((Z, Z), lambda i, k: (0, 0)),     # w2 (bf16, resident)
                pl.BlockSpec((1, Z), lambda i, k: (0, 0)),     # b2 (resident)
                pl.BlockSpec((Z, Lp), lambda i, k: (0, 0)),    # w3 (bf16, lane-padded, resident)
                pl.BlockSpec((1, Lp), lambda i, k: (0, 0)),    # b3 (lane-padded, resident)
            ],
            out_specs=(
                pl.BlockSpec((tb, Lp), lambda i, k: (i, 0)),
                pl.BlockSpec((tb, Z), lambda i, k: (i, 0)),
            ),
            scratch_shapes=[pltpu.VMEM((tb, Z), jnp.float32)],
        ),
        compiler_params=pltpu.CompilerParams(
            dimension_semantics=("parallel", "arbitrary"),
            vmem_limit_bytes=vmem_limit,
        ),
    )(xp, params["w1"], params["b1"], params["w2"], params["b2"],
      params["w3"], params["b3"])

    return logits_pad[:B, :L], normed_pad[:B]


# --- references -------------------------------------------------------------

def _q(a):
    """bf16 quantization roundtrip (the kernel's matmul-input precision)."""
    return a.astype(jnp.bfloat16).astype(jnp.float32)


def t_forward_ref_f32(x, w1, b1, w2, b2, w3, b3):
    hp = jax.lax.Precision.HIGHEST
    t1 = jnp.dot(x, w1, precision=hp) + b1
    t2 = jnp.dot(t1, w2, precision=hp) + b2
    logits = jnp.dot(t2, w3, precision=hp) + b3
    nrm = jnp.sqrt(jnp.sum(t2 * t2, axis=1, keepdims=True))
    return logits, t2 / jnp.maximum(nrm, 1e-12)


def t_forward_ref(x, w1, b1, w2, b2, w3, b3):
    # Same quantization points as the kernel: bf16 inputs to every matmul,
    # f32 accumulation, f32 bias adds / normalize.
    hp = jax.lax.Precision.HIGHEST
    t1 = jnp.dot(_q(x), _q(w1), precision=hp) + b1
    t2 = jnp.dot(_q(t1), _q(w2), precision=hp) + b2
    logits = jnp.dot(_q(t2), _q(w3), precision=hp) + b3
    nrm = jnp.sqrt(jnp.sum(t2 * t2, axis=1, keepdims=True))
    return logits, t2 / jnp.maximum(nrm, 1e-12)


if __name__ == "__main__":
    # Small shapes consistent with the module (defaults: max_features=9000,
    # z_dim=hidden_size=768, label_size=2), scaled down but chosen so the grid is
    # multi-tile on both axes (B=100 -> 2 batch tiles of 64; F=2000 -> 4 reduction
    # tiles of 512 with a 48-feature zero-padded tail), exercising batch padding,
    # F padding, and the lane-padded label head.
    B, FEAT, Z, L = 100, 2000, 256, 2

    key = jax.random.PRNGKey(0)
    kx, k1, kb1, k2, kb2, k3, kb3 = jax.random.split(key, 7)

    x = jax.random.uniform(kx, (B, FEAT), dtype=jnp.float32)   # dense tf-idf features

    # Deterministic parameters (weights stored pre-transposed: (in, out)).
    w1 = jax.random.normal(k1, (FEAT, Z), dtype=jnp.float32) * 0.02
    b1 = jax.random.normal(kb1, (1, Z), dtype=jnp.float32) * 0.02
    w2 = jax.random.normal(k2, (Z, Z), dtype=jnp.float32) * 0.02
    b2 = jax.random.normal(kb2, (1, Z), dtype=jnp.float32) * 0.02
    w3 = jax.random.normal(k3, (Z, L), dtype=jnp.float32) * 0.02
    b3 = jax.random.normal(kb3, (1, L), dtype=jnp.float32) * 0.02

    # One-time weight prep (model-load time), then the per-call forward.
    params = prepare_t_params(w1, b1, w2, b2, w3, b3, tb=64, tf=512)
    logits, normed = t_forward(x, params)
    jax.block_until_ready((logits, normed))

    assert logits.shape == (B, L) and normed.shape == (B, Z)

    # Tight check against a reference doing the same bf16-quantized matmul math.
    ref_logits, ref_normed = t_forward_ref(x, w1, b1, w2, b2, w3, b3)
    assert jnp.allclose(logits, ref_logits, atol=3e-3, rtol=3e-2), \
        float(jnp.max(jnp.abs(logits - ref_logits)))
    assert jnp.allclose(normed, ref_normed, atol=3e-3, rtol=3e-2), \
        float(jnp.max(jnp.abs(normed - ref_normed)))

    # Looser sanity check against pure-f32 math (absorbs bf16 quantization).
    f32_logits, f32_normed = t_forward_ref_f32(x, w1, b1, w2, b2, w3, b3)
    assert jnp.allclose(logits, f32_logits, atol=3e-2, rtol=3e-2)
    assert jnp.allclose(normed, f32_normed, atol=3e-2, rtol=3e-2)

    print("KERNEL_OK")
</pallas_src>

<mosaic_0001>
module attributes {stable_mosaic.version = 11 : i64} {
  func.func @t_forward_kernel(%arg0: i32, %arg1: i32, %arg2: memref<64x512xf32, #tpu.memory_space<vmem>>, %arg3: memref<512x256xbf16, #tpu.memory_space<vmem>>, %arg4: memref<1x256xf32, #tpu.memory_space<vmem>>, %arg5: memref<256x256xbf16, #tpu.memory_space<vmem>>, %arg6: memref<1x256xf32, #tpu.memory_space<vmem>>, %arg7: memref<256x128xbf16, #tpu.memory_space<vmem>>, %arg8: memref<1x128xf32, #tpu.memory_space<vmem>>, %arg9: memref<64x128xf32, #tpu.memory_space<vmem>>, %arg10: memref<64x256xf32, #tpu.memory_space<vmem>>, %arg11: memref<64x256xf32, #tpu.memory_space<vmem>>) attributes {dimension_semantics = [#tpu.dimension_semantics<parallel>, #tpu.dimension_semantics<arbitrary>], iteration_bounds = array<i64: 2, 4>, scalar_prefetch = 0 : i64, scratch_operands = 1 : i64, tpu.core_type = #tpu.core_type<tc>, window_params = [{transform_indices = @transform_0, window_bounds = array<i64: 64, 512>}, {transform_indices = @transform_1, window_bounds = array<i64: 512, 256>}, {pipeline_mode = #tpu.pipeline_mode<synchronous>, transform_indices = @transform_2, window_bounds = array<i64: 1, 256>}, {pipeline_mode = #tpu.pipeline_mode<synchronous>, transform_indices = @transform_3, window_bounds = array<i64: 256, 256>}, {pipeline_mode = #tpu.pipeline_mode<synchronous>, transform_indices = @transform_4, window_bounds = array<i64: 1, 256>}, {pipeline_mode = #tpu.pipeline_mode<synchronous>, transform_indices = @transform_5, window_bounds = array<i64: 256, 128>}, {pipeline_mode = #tpu.pipeline_mode<synchronous>, transform_indices = @transform_6, window_bounds = array<i64: 1, 128>}, {transform_indices = @transform_7, window_bounds = array<i64: 64, 128>}, {transform_indices = @transform_8, window_bounds = array<i64: 64, 256>}]} {
    %c0_i32 = arith.constant 0 : i32
    %0 = arith.cmpi eq, %arg1, %c0_i32 : i32
    %1 = arith.extui %0 : i1 to i32
    %c0_i32_0 = arith.constant 0 : i32
    %2 = arith.cmpi ne, %1, %c0_i32_0 : i32
    scf.if %2 {
      %cst_9 = arith.constant 0.000000e+00 : f32
      %13 = vector.broadcast %cst_9 : f32 to vector<64x256xf32>
      %c0_10 = arith.constant 0 : index
      %c0_11 = arith.constant 0 : index
      %14 = vector.load %arg11[%c0_10, %c0_11] : memref<64x256xf32, #tpu.memory_space<vmem>>, vector<64x256xf32>
      tpu.vector_store %arg11[%c0_10, %c0_11], %13 {strides = array<i32>} : memref<64x256xf32, #tpu.memory_space<vmem>>, vector<64x256xf32>,
    } else {
    }
    %c0 = arith.constant 0 : index
    %c0_1 = arith.constant 0 : index
    %3 = vector.load %arg11[%c0, %c0_1] : memref<64x256xf32, #tpu.memory_space<vmem>>, vector<64x256xf32>
    %c0_2 = arith.constant 0 : index
    %c0_3 = arith.constant 0 : index
    %4 = vector.load %arg2[%c0_2, %c0_3] : memref<64x512xf32, #tpu.memory_space<vmem>>, vector<64x512xf32>
    %5 = arith.truncf %4 : vector<64x512xf32> to vector<64x512xbf16>
    %c0_4 = arith.constant 0 : index
    %c0_5 = arith.constant 0 : index
    %6 = vector.load %arg3[%c0_4, %c0_5] : memref<512x256xbf16, #tpu.memory_space<vmem>>, vector<512x256xbf16>
    %cst = arith.constant dense<0.000000e+00> : vector<64x256xf32>
    %7 = tpu.matmul %5, %6, %cst {dimension_numbers = #tpu.dot_dimension_numbers<[1], [0], [0], [1], [0, 0, 1, 1], [], []>} : vector<64x512xbf16>, vector<512x256xbf16>, vector<64x256xf32> -> vector<64x256xf32>
    %8 = arith.addf %3, %7 : vector<64x256xf32>
    %c0_6 = arith.constant 0 : index
    %c0_7 = arith.constant 0 : index
    %9 = vector.load %arg11[%c0_6, %c0_7] : memref<64x256xf32, #tpu.memory_space<vmem>>, vector<64x256xf32>
    tpu.vector_store %arg11[%c0_6, %c0_7], %8 {strides = array<i32>} : memref<64x256xf32, #tpu.memory_space<vmem>>, vector<64x256xf32>,
    %c3_i32 = arith.constant 3 : i32
    %10 = arith.cmpi eq, %arg1, %c3_i32 : i32
    %11 = arith.extui %10 : i1 to i32
    %c0_i32_8 = arith.constant 0 : i32
    %12 = arith.cmpi ne, %11, %c0_i32_8 : i32
    scf.if %12 {
      %c0_9 = arith.constant 0 : index
      %c0_10 = arith.constant 0 : index
      %13 = vector.load %arg11[%c0_9, %c0_10] : memref<64x256xf32, #tpu.memory_space<vmem>>, vector<64x256xf32>
      %c0_11 = arith.constant 0 : index
      %c0_12 = arith.constant 0 : index
      %14 = vector.load %arg4[%c0_11, %c0_12] : memref<1x256xf32, #tpu.memory_space<vmem>>, vector<1x256xf32>
      %15 = vector.broadcast %14 : vector<1x256xf32> to vector<64x256xf32>
      %16 = arith.addf %13, %15 : vector<64x256xf32>
      %17 = arith.truncf %16 : vector<64x256xf32> to vector<64x256xbf16>
      %c0_13 = arith.constant 0 : index
      %c0_14 = arith.constant 0 : index
      %18 = vector.load %arg5[%c0_13, %c0_14] : memref<256x256xbf16, #tpu.memory_space<vmem>>, vector<256x256xbf16>
      %cst_15 = arith.constant dense<0.000000e+00> : vector<64x256xf32>
      %19 = tpu.matmul %17, %18, %cst_15 {dimension_numbers = #tpu.dot_dimension_numbers<[1], [0], [0], [1], [0, 0, 1, 1], [], []>} : vector<64x256xbf16>, vector<256x256xbf16>, vector<64x256xf32> -> vector<64x256xf32>
      %c0_16 = arith.constant 0 : index
      %c0_17 = arith.constant 0 : index
      %20 = vector.load %arg6[%c0_16, %c0_17] : memref<1x256xf32, #tpu.memory_space<vmem>>, vector<1x256xf32>
      %21 = vector.broadcast %20 : vector<1x256xf32> to vector<64x256xf32>
      %22 = arith.addf %19, %21 : vector<64x256xf32>
      %23 = arith.truncf %22 : vector<64x256xf32> to vector<64x256xbf16>
      %c0_18 = arith.constant 0 : index
      %c0_19 = arith.constant 0 : index
      %24 = vector.load %arg7[%c0_18, %c0_19] : memref<256x128xbf16, #tpu.memory_space<vmem>>, vector<256x128xbf16>
      %cst_20 = arith.constant dense<0.000000e+00> : vector<64x128xf32>
      %25 = tpu.matmul %23, %24, %cst_20 {dimension_numbers = #tpu.dot_dimension_numbers<[1], [0], [0], [1], [0, 0, 1, 1], [], []>} : vector<64x256xbf16>, vector<256x128xbf16>, vector<64x128xf32> -> vector<64x128xf32>
      %c0_21 = arith.constant 0 : index
      %c0_22 = arith.constant 0 : index
      %26 = vector.load %arg8[%c0_21, %c0_22] : memref<1x128xf32, #tpu.memory_space<vmem>>, vector<1x128xf32>
      %27 = vector.broadcast %26 : vector<1x128xf32> to vector<64x128xf32>
      %28 = arith.addf %25, %27 : vector<64x128xf32>
      %c0_23 = arith.constant 0 : index
      %c0_24 = arith.constant 0 : index
      %29 = vector.load %arg9[%c0_23, %c0_24] : memref<64x128xf32, #tpu.memory_space<vmem>>, vector<64x128xf32>
      tpu.vector_store %arg9[%c0_23, %c0_24], %28 {strides = array<i32>} : memref<64x128xf32, #tpu.memory_space<vmem>>, vector<64x128xf32>,
      %30 = arith.mulf %22, %22 : vector<64x256xf32>
      %cst_25 = arith.constant dense<0.000000e+00> : vector<64xf32>
      %31 = vector.multi_reduction <add>, %30, %cst_25 [1] : vector<64x256xf32> to vector<64xf32>
      %32 = vector.shape_cast %31 : vector<64xf32> to vector<64x1xf32>
      %cst_26 = arith.constant 1.000000e-24 : f32
      %33 = vector.broadcast %cst_26 : f32 to vector<64x1xf32>
      %34 = arith.maximumf %32, %33 : vector<64x1xf32>
      %35 = math.rsqrt %34 : vector<64x1xf32>
      %36 = vector.broadcast %35 : vector<64x1xf32> to vector<64x256xf32>
      %37 = arith.mulf %22, %36 : vector<64x256xf32>
      %c0_27 = arith.constant 0 : index
      %c0_28 = arith.constant 0 : index
      %38 = vector.load %arg10[%c0_27, %c0_28] : memref<64x256xf32, #tpu.memory_space<vmem>>, vector<64x256xf32>
      tpu.vector_store %arg10[%c0_27, %c0_28], %37 {strides = array<i32>} : memref<64x256xf32, #tpu.memory_space<vmem>>, vector<64x256xf32>,
    } else {
    }
    return
  }
  func.func @transform_0(%arg0: i32, %arg1: i32) -> (i32, i32) {
    %c0_i32 = arith.constant 0 : i32
    return %arg0, %arg1 : i32, i32
  }
  func.func @transform_1(%arg0: i32, %arg1: i32) -> (i32, i32) {
    %c0_i32 = arith.constant 0 : i32
    %c0_i32_0 = arith.constant 0 : i32
    return %arg1, %c0_i32 : i32, i32
  }
  func.func @transform_2(%arg0: i32, %arg1: i32) -> (i32, i32) {
    %c0_i32 = arith.constant 0 : i32
    %c0_i32_0 = arith.constant 0 : i32
    %c0_i32_1 = arith.constant 0 : i32
    return %c0_i32, %c0_i32_0 : i32, i32
  }
  func.func @transform_3(%arg0: i32, %arg1: i32) -> (i32, i32) {
    %c0_i32 = arith.constant 0 : i32
    %c0_i32_0 = arith.constant 0 : i32
    %c0_i32_1 = arith.constant 0 : i32
    return %c0_i32, %c0_i32_0 : i32, i32
  }
  func.func @transform_4(%arg0: i32, %arg1: i32) -> (i32, i32) {
    %c0_i32 = arith.constant 0 : i32
    %c0_i32_0 = arith.constant 0 : i32
    %c0_i32_1 = arith.constant 0 : i32
    return %c0_i32, %c0_i32_0 : i32, i32
  }
  func.func @transform_5(%arg0: i32, %arg1: i32) -> (i32, i32) {
    %c0_i32 = arith.constant 0 : i32
    %c0_i32_0 = arith.constant 0 : i32
    %c0_i32_1 = arith.constant 0 : i32
    return %c0_i32, %c0_i32_0 : i32, i32
  }
  func.func @transform_6(%arg0: i32, %arg1: i32) -> (i32, i32) {
    %c0_i32 = arith.constant 0 : i32
    %c0_i32_0 = arith.constant 0 : i32
    %c0_i32_1 = arith.constant 0 : i32
    return %c0_i32, %c0_i32_0 : i32, i32
  }
  func.func @transform_7(%arg0: i32, %arg1: i32) -> (i32, i32) {
    %c0_i32 = arith.constant 0 : i32
    %c0_i32_0 = arith.constant 0 : i32
    return %arg0, %c0_i32 : i32, i32
  }
  func.func @transform_8(%arg0: i32, %arg1: i32) -> (i32, i32) {
    %c0_i32 = arith.constant 0 : i32
    %c0_i32_0 = arith.constant 0 : i32
    return %arg0, %c0_i32 : i32, i32
  }
}

</mosaic_0001>

<llo_original>
// kernel: tpu_custom_call.1
$region0: #{tpu_custom_call.1}
  #allocation0 [shape = 'u32[]', space=smem, size = 0x4, offset = 0x4, fixed_abs, tag = 'smem constant byte address 0x4 - core index']
  #allocation1 [shape = 'u32[144,128]{1,0:T(1,128)}', space=vmem, size = 0x12000, scoped, tag = 'internal scratch']
  #allocation2 [shape = 'f32[64,256]{1,0:T(8,128)}', space=vmem, size = 0x10000, scoped, tag = 'scratch operand']
  %s0 = inlined_call_operand.hbm [shape: f32[128,2048], index: 0, kind: input, shape index: {}]
  %s1 = inlined_call_operand.hbm [shape: bf16[2048,256], index: 1, kind: input, shape index: {}]
  %s2 = inlined_call_operand.vmem [shape: f32[1,256], index: 2, kind: input, shape index: {}]
  %s3 = inlined_call_operand.hbm [shape: bf16[256,256], index: 3, kind: input, shape index: {}]
  %s4 = inlined_call_operand.vmem [shape: f32[1,256], index: 4, kind: input, shape index: {}]
  %s5 = inlined_call_operand.hbm [shape: bf16[256,128], index: 5, kind: input, shape index: {}]
  %s6 = inlined_call_operand.vmem [shape: f32[1,128], index: 6, kind: input, shape index: {}]
  %s7 = inlined_call_operand.hbm [shape: f32[128,128], index: 7, kind: output, shape index: {0}]
  %s8 = inlined_call_operand.hbm [shape: f32[128,256], index: 8, kind: output, shape index: {1}]
  %9 = xla_tuple %s7, %s8
  %s10 = sld [smem:[#allocation0]]
  $region93: #{tpu_custom_call.1} parent=0
    _
  %s12 = ssub.s32 1, %s10
  %s13 = scalar_select 0, %s12, %s10
  $region1: #{tpu_custom_call.1} parent=0
    #allocation3 [shape = 'u8[262144]{0}', space=vmem, size = 0x40000, scoped, tag = 'input window, operand 0']
    #allocation4 [shape = 's32[2]{0}', space=sflag, size = 0x8, scoped, tag = 'scoped memory for tpu_custom_call.1']
    #allocation5 [shape = 's32[2]{0}', space=sflag, size = 0x8, scoped, tag = 'scoped memory for tpu_custom_call.1']
    #allocation6 [shape = 'u8[524288]{0}', space=vmem, size = 0x80000, scoped, tag = 'input window, operand 1']
    #allocation7 [shape = 's32[2]{0}', space=sflag, size = 0x8, scoped, tag = 'scoped memory for tpu_custom_call.1']
    #allocation8 [shape = 'u8[131072]{0}', space=vmem, size = 0x20000, scoped, tag = 'input window, operand 3, single buffered']
    #allocation9 [shape = 'u8[65536]{0}', space=vmem, size = 0x10000, scoped, tag = 'input window, operand 5, single buffered']
    #allocation10 [shape = 's32[1]{0}', space=sflag, size = 0x4, scoped, tag = 'scoped memory for tpu_custom_call.1']
    #allocation11 [shape = 'u8[65536]{0}', space=vmem, size = 0x10000, scoped, tag = 'output window, operand 0']
    #allocation12 [shape = 'u8[131072]{0}', space=vmem, size = 0x20000, scoped, tag = 'output window, operand 1']
    #allocation13 [shape = 's32[2]{0}', space=sflag, size = 0x8, scoped, tag = 'scoped memory for tpu_custom_call.1']
    %14 = vsyncpa [#allocation4], 0
    %s15 = scalar_lea.sflag [#allocation4], 1
    %16 = vsyncpa %s15, 0
    %17 = vsyncpa [#allocation7], 0
    %s18 = scalar_lea.sflag [#allocation7], 1
    %19 = vsyncpa %s18, 0
    %20 = vsyncpa [#allocation10], 0
    %21 = vsyncpa [#allocation5], 0
    %s22 = scalar_lea.sflag [#allocation5], 1
    %23 = vsyncpa %s22, 0
    %24 = vsyncpa [#allocation13], 0
    %s25 = scalar_lea.sflag [#allocation13], 1
    %26 = vsyncpa %s25, 0
    loop: start=0, step=1, limit=10
    $region2: #{tpu_custom_call.1} parent=1 // loop_pre_header
      _
    $region3: #{tpu_custom_call.1} parent=1 // loop_header
      %s28 = sphi 0, %s32
      %p29 = scmp.ge.s32.totalorder %s28, 10
      %s35 = sphi 0, %s47
      %s36 = sphi 0, %s43
      %s37 = sphi 0, %s35
      %s38 = sphi 0, %s36
      %s39 = sphi 0, %s37
      %s40 = sphi 0, %s38
      %s52 = sphi 0, %s54
      %s55 = sphi 0, %s52
      %s56 = sphi 0, %s55
      %s72 = sphi 0, %s56
      %s78 = sphi 0, %s80
      %s81 = sphi 0, %s78
      %s82 = sphi 0, %s81
      %s98 = sphi 0, %s82
      %s102 = sphi 0, %s102
      %s104 = sphi 0, %s102
      %s105 = sphi 0, %s104
      %s119 = sphi 0, %s105
      %s123 = sphi 0, %s123
      %s125 = sphi 0, %s123
      %s126 = sphi 0, %s125
      %s140 = sphi 0, %s126
      %s144 = sphi 0, %s144
      %s146 = sphi 0, %s144
      %s147 = sphi 0, %s146
      %s161 = sphi 0, %s147
      %s165 = sphi 0, %s165
      %s167 = sphi 0, %s165
      %s168 = sphi 0, %s167
      %s182 = sphi 0, %s168
      %s186 = sphi 0, %s186
      %s188 = sphi 0, %s186
      %s189 = sphi 0, %s188
      %s203 = sphi 0, %s189
      %s209 = sphi 0, %s211
      %s212 = sphi 0, %s209
      %s213 = sphi 0, %s212
      %s229 = sphi 0, %s213
      %s235 = sphi 0, %s237
      %s238 = sphi 0, %s235
      %s239 = sphi 0, %s238
      %s255 = sphi 0, %s239
    $region4: #{tpu_custom_call.1} parent=1 // loop_header_branch
      %31 = sbr.rel (%p29) target = $region8
    $region5: #{tpu_custom_call.1} parent=1 // loop_body
      %s33 = ssub.s32 %s28, 1
      %s34 = ssub.s32 %s28, 2
      %s41 = sadd.s32 1, %s36
      %p42 = scmp.ge.s32.totalorder %s41, 4
      %s43 = scalar_select %p42, 0, %s41
      %s44 = sadd.s32 1, %s35
      %s45 = scalar_select %p42, %s44, %s35
      %p46 = scmp.ge.s32.totalorder %s45, 2
      %s47 = scalar_select %p46, 0, %s45
      %s48 = ssub.s32 %s35, %s47
      %s49 = ssub.s32 %s36, %s43
      %s50 = sor.u32 %s48, %s49
      %p51 = scmp.eq.s32.totalorder %s50, 0
      %s53 = sadd.s32 %s52, 1
      %s54 = scalar_select %p51, %s52, %s53
      %p57 = pneg %p51
      %p58 = scmp.eq.s32.totalorder %s28, 7
      %p59 = por %p57, %p58
      %p60 = scmp.ne.s32.totalorder %s52, %s55
      %p61 = scmp.eq.s32.totalorder %s28, 0
      %p62 = por %p60, %p61
      %p63 = scmp.ne.s32.totalorder %s52, %s55
      %p64 = scmp.eq.s32.totalorder %s33, 7
      %p65 = por %p63, %p64
      %p66 = scmp.ne.s32.totalorder %s55, %s56
      %p67 = scmp.eq.s32.totalorder %s33, 0
      %p68 = por %p66, %p67
      %p69 = scmp.ne.s32.totalorder %s55, %s56
      %p70 = scmp.eq.s32.totalorder %s34, 7
      %p71 = por %p69, %p70
      %p73 = scmp.ne.s32.totalorder %s56, %s72
      %p74 = scmp.eq.s32.totalorder %s34, 0
      %p75 = por %p73, %p74
      %s76 = ssub.s32 %s36, %s43
      %p77 = scmp.eq.s32.totalorder %s76, 0
      %s79 = sadd.s32 %s78, 1
      %s80 = scalar_select %p77, %s78, %s79
      %p83 = pneg %p77
      %p84 = scmp.eq.s32.totalorder %s28, 7
      %p85 = por %p83, %p84
      %p86 = scmp.ne.s32.totalorder %s78, %s81
      %p87 = scmp.eq.s32.totalorder %s28, 0
      %p88 = por %p86, %p87
      %p89 = scmp.ne.s32.totalorder %s78, %s81
      %p90 = scmp.eq.s32.totalorder %s33, 7
      %p91 = por %p89, %p90
      %p92 = scmp.ne.s32.totalorder %s81, %s82
      %p93 = scmp.eq.s32.totalorder %s33, 0
      %p94 = por %p92, %p93
      %p95 = scmp.ne.s32.totalorder %s81, %s82
      %p96 = scmp.eq.s32.totalorder %s34, 7
      %p97 = por %p95, %p96
      %p99 = scmp.ne.s32.totalorder %s82, %s98
      %p100 = scmp.eq.s32.totalorder %s34, 0
      %p101 = por %p99, %p100
      %s103 = sadd.s32 %s102, 1
      %p106 = scmp.eq.s32.totalorder %s28, 7
      %p107 = scmp.ne.s32.totalorder %s102, %s104
      %p108 = scmp.eq.s32.totalorder %s28, 0
      %p109 = por %p107, %p108
      %p110 = scmp.ne.s32.totalorder %s102, %s104
      %p111 = scmp.eq.s32.totalorder %s33, 7
      %p112 = por %p110, %p111
      %p113 = scmp.ne.s32.totalorder %s104, %s105
      %p114 = scmp.eq.s32.totalorder %s33, 0
      %p115 = por %p113, %p114
      %p116 = scmp.ne.s32.totalorder %s104, %s105
      %p117 = scmp.eq.s32.totalorder %s34, 7
      %p118 = por %p116, %p117
      %p120 = scmp.ne.s32.totalorder %s105, %s119
      %p121 = scmp.eq.s32.totalorder %s34, 0
      %p122 = por %p120, %p121
      %s124 = sadd.s32 %s123, 1
      %p127 = scmp.eq.s32.totalorder %s28, 7
      %p128 = scmp.ne.s32.totalorder %s123, %s125
      %p129 = scmp.eq.s32.totalorder %s28, 0
      %p130 = por %p128, %p129
      %p131 = scmp.ne.s32.totalorder %s123, %s125
      %p132 = scmp.eq.s32.totalorder %s33, 7
      %p133 = por %p131, %p132
      %p134 = scmp.ne.s32.totalorder %s125, %s126
      %p135 = scmp.eq.s32.totalorder %s33, 0
      %p136 = por %p134, %p135
      %p137 = scmp.ne.s32.totalorder %s125, %s126
      %p138 = scmp.eq.s32.totalorder %s34, 7
      %p139 = por %p137, %p138
      %p141 = scmp.ne.s32.totalorder %s126, %s140
      %p142 = scmp.eq.s32.totalorder %s34, 0
      %p143 = por %p141, %p142
      %s145 = sadd.s32 %s144, 1
      %p148 = scmp.eq.s32.totalorder %s28, 7
      %p149 = scmp.ne.s32.totalorder %s144, %s146
      %p150 = scmp.eq.s32.totalorder %s28, 0
      %p151 = por %p149, %p150
      %p152 = scmp.ne.s32.totalorder %s144, %s146
      %p153 = scmp.eq.s32.totalorder %s33, 7
      %p154 = por %p152, %p153
      %p155 = scmp.ne.s32.totalorder %s146, %s147
      %p156 = scmp.eq.s32.totalorder %s33, 0
      %p157 = por %p155, %p156
      %p158 = scmp.ne.s32.totalorder %s146, %s147
      %p159 = scmp.eq.s32.totalorder %s34, 7
      %p160 = por %p158, %p159
      %p162 = scmp.ne.s32.totalorder %s147, %s161
      %p163 = scmp.eq.s32.totalorder %s34, 0
      %p164 = por %p162, %p163
      %s166 = sadd.s32 %s165, 1
      %p169 = scmp.eq.s32.totalorder %s28, 7
      %p170 = scmp.ne.s32.totalorder %s165, %s167
      %p171 = scmp.eq.s32.totalorder %s28, 0
      %p172 = por %p170, %p171
      %p173 = scmp.ne.s32.totalorder %s165, %s167
      %p174 = scmp.eq.s32.totalorder %s33, 7
      %p175 = por %p173, %p174
      %p176 = scmp.ne.s32.totalorder %s167, %s168
      %p177 = scmp.eq.s32.totalorder %s33, 0
      %p178 = por %p176, %p177
      %p179 = scmp.ne.s32.totalorder %s167, %s168
      %p180 = scmp.eq.s32.totalorder %s34, 7
      %p181 = por %p179, %p180
      %p183 = scmp.ne.s32.totalorder %s168, %s182
      %p184 = scmp.eq.s32.totalorder %s34, 0
      %p185 = por %p183, %p184
      %s187 = sadd.s32 %s186, 1
      %p190 = scmp.eq.s32.totalorder %s28, 7
      %p191 = scmp.ne.s32.totalorder %s186, %s188
      %p192 = scmp.eq.s32.totalorder %s28, 0
      %p193 = por %p191, %p192
      %p194 = scmp.ne.s32.totalorder %s186, %s188
      %p195 = scmp.eq.s32.totalorder %s33, 7
      %p196 = por %p194, %p195
      %p197 = scmp.ne.s32.totalorder %s188, %s189
      %p198 = scmp.eq.s32.totalorder %s33, 0
      %p199 = por %p197, %p198
      %p200 = scmp.ne.s32.totalorder %s188, %s189
      %p201 = scmp.eq.s32.totalorder %s34, 7
      %p202 = por %p200, %p201
      %p204 = scmp.ne.s32.totalorder %s189, %s203
      %p205 = scmp.eq.s32.totalorder %s34, 0
      %p206 = por %p204, %p205
      %s207 = ssub.s32 %s35, %s47
      %p208 = scmp.eq.s32.totalorder %s207, 0
      %s210 = sadd.s32 %s209, 1
      %s211 = scalar_select %p208, %s209, %s210
      %p214 = pneg %p208
      %p215 = scmp.eq.s32.totalorder %s28, 7
      %p216 = por %p214, %p215
      %p217 = scmp.ne.s32.totalorder %s209, %s212
      %p218 = scmp.eq.s32.totalorder %s28, 0
      %p219 = por %p217, %p218
      %p220 = scmp.ne.s32.totalorder %s209, %s212
      %p221 = scmp.eq.s32.totalorder %s33, 7
      %p222 = por %p220, %p221
      %p223 = scmp.ne.s32.totalorder %s212, %s213
      %p224 = scmp.eq.s32.totalorder %s33, 0
      %p225 = por %p223, %p224
      %p226 = scmp.ne.s32.totalorder %s212, %s213
      %p227 = scmp.eq.s32.totalorder %s34, 7
      %p228 = por %p226, %p227
      %p230 = scmp.ne.s32.totalorder %s213, %s229
      %p231 = scmp.eq.s32.totalorder %s34, 0
      %p232 = por %p230, %p231
      %s233 = ssub.s32 %s35, %s47
      %p234 = scmp.eq.s32.totalorder %s233, 0
      %s236 = sadd.s32 %s235, 1
      %s237 = scalar_select %p234, %s235, %s236
      %p240 = pneg %p234
      %p241 = scmp.eq.s32.totalorder %s28, 7
      %p242 = por %p240, %p241
      %p243 = scmp.ne.s32.totalorder %s235, %s238
      %p244 = scmp.eq.s32.totalorder %s28, 0
      %p245 = por %p243, %p244
      %p246 = scmp.ne.s32.totalorder %s235, %s238
      %p247 = scmp.eq.s32.totalorder %s33, 7
      %p248 = por %p246, %p247
      %p249 = scmp.ne.s32.totalorder %s238, %s239
      %p250 = scmp.eq.s32.totalorder %s33, 0
      %p251 = por %p249, %p250
      %p252 = scmp.ne.s32.totalorder %s238, %s239
      %p253 = scmp.eq.s32.totalorder %s34, 7
      %p254 = por %p252, %p253
      %p256 = scmp.ne.s32.totalorder %s239, %s255
      %p257 = scmp.eq.s32.totalorder %s34, 0
      %p258 = por %p256, %p257
      %p259 = scmp.le.s32.totalorder 1, %s28
      %p260 = scmp.lt.s32.totalorder %s28, 9
      %p261 = pnand %p259, %p260
      %p262 = pneg %p261
      // Predicated region
      $region9: #{tpu_custom_call.1} parent=5 // pred_check
        _
      $region10: #{tpu_custom_call.1} parent=5 // pred_check_branch
        %264 = sbr.rel (%p261) target = $region12
      $region11: #{tpu_custom_call.1} parent=5 // pred_region
        %s265 = ssub.s32 %s28, 1
        // Predicated region
        $region13: #{tpu_custom_call.1} parent=11 // pred_check
          %p266 = pneg %p115
        $region14: #{tpu_custom_call.1} parent=11 // pred_check_branch
          %268 = sbr.rel (%p266) target = $region16
        $region15: #{tpu_custom_call.1} parent=11 // pred_region
          _
        $region16: #{tpu_custom_call.1} parent=11 // pred_fallthru
          _
        // Predicated region
        $region17: #{tpu_custom_call.1} parent=11 // pred_check
          %p269 = pneg %p136
        $region18: #{tpu_custom_call.1} parent=11 // pred_check_branch
          %271 = sbr.rel (%p269) target = $region20
        $region19: #{tpu_custom_call.1} parent=11 // pred_region
          %s273 = ssub.s32 4096, 4096
          %274 = vsyncadd [#allocation7], %s273
          %s275 = sshll.u32 [#allocation8], 4
          %s276 = int_to_ptr.vmem [resolvable:$true] %s275
          %281 = dma.hbm_to_vmem [thread:$0]  %s3, 4096, %s276, [#allocation7], 128, 128, 8
        $region20: #{tpu_custom_call.1} parent=11 // pred_fallthru
          _
        // Predicated region
        $region21: #{tpu_custom_call.1} parent=11 // pred_check
          %p282 = pneg %p157
        $region22: #{tpu_custom_call.1} parent=11 // pred_check_branch
          %284 = sbr.rel (%p282) target = $region24
        $region23: #{tpu_custom_call.1} parent=11 // pred_region
          _
        $region24: #{tpu_custom_call.1} parent=11 // pred_fallthru
          _
        // Predicated region
        $region25: #{tpu_custom_call.1} parent=11 // pred_check
          %p285 = pneg %p178
        $region26: #{tpu_custom_call.1} parent=11 // pred_check_branch
          %287 = sbr.rel (%p285) target = $region28
        $region27: #{tpu_custom_call.1} parent=11 // pred_region
          %s289 = ssub.s32 2048, 2048
          %290 = vsyncadd [#allocation10], %s289
          %s291 = sshll.u32 [#allocation9], 4
          %s292 = int_to_ptr.vmem [resolvable:$true] %s291
          %297 = dma.hbm_to_vmem [thread:$0]  %s5, 2048, %s292, [#allocation10], 64, 64, 4
        $region28: #{tpu_custom_call.1} parent=11 // pred_fallthru
          _
        // Predicated region
        $region29: #{tpu_custom_call.1} parent=11 // pred_check
          %p298 = pneg %p199
        $region30: #{tpu_custom_call.1} parent=11 // pred_check_branch
          %300 = sbr.rel (%p298) target = $region32
        $region31: #{tpu_custom_call.1} parent=11 // pred_region
          _
        $region32: #{tpu_custom_call.1} parent=11 // pred_fallthru
          _
      $region12: #{tpu_custom_call.1} parent=5 // pred_fallthru
        _
      %p301 = scmp.lt.s32.totalorder %s28, 8
      // Predicated region
      $region33: #{tpu_custom_call.1} parent=5 // pred_check
        %p302 = pneg %p301
      $region34: #{tpu_custom_call.1} parent=5 // pred_check_branch
        %304 = sbr.rel (%p302) target = $region36
      $region35: #{tpu_custom_call.1} parent=5 // pred_region
        // Predicated region
        $region37: #{tpu_custom_call.1} parent=35 // pred_check
          %p305 = pneg %p62
        $region38: #{tpu_custom_call.1} parent=35 // pred_check_branch
          %307 = sbr.rel (%p305) target = $region40
        $region39: #{tpu_custom_call.1} parent=35 // pred_region
          %s308 = sand.u32 %s52, 1
          %s309 = scalar_lea.sflag [#allocation4], %s308
          %s310 = sand.u32 %s52, 1
          %s311 = smul.addr %s310, 256
          %s312 = scalar_lea.vmem [#allocation3], %s311
          %s313 = smul.u32 8, %s35
          %s314 = smul.u32 4, %s36
          %s316 = ssub.s32 4096, 4096
          %317 = vsyncadd %s309, %s316
          %s318 = smul.addr %s313, 16
          %s319 = sadd.s32 %s314, %s318
          %s320 = smul.addr %s319, 128
          %s321 = scalar_lea.hbm %s0, %s320
          %s322 = sshll.u32 %s312, 4
          %s323 = int_to_ptr.vmem [resolvable:$true] %s322
          %328 = dma.hbm_to_vmem [thread:$0]  %s321, 4096, %s323, %s309, 2048, 512, 32
        $region40: #{tpu_custom_call.1} parent=35 // pred_fallthru
          _
        // Predicated region
        $region41: #{tpu_custom_call.1} parent=35 // pred_check
          %p329 = pneg %p88
        $region42: #{tpu_custom_call.1} parent=35 // pred_check_branch
          %331 = sbr.rel (%p329) target = $region44
        $region43: #{tpu_custom_call.1} parent=35 // pred_region
          %s332 = sand.u32 %s28, 1
          %s333 = scalar_lea.sflag [#allocation7], %s332
          %s334 = sand.u32 %s78, 1
          %s335 = smul.addr %s334, 512
          %s336 = scalar_lea.vmem [#allocation6], %s335
          %s337 = smul.u32 64, %s36
          %s339 = ssub.s32 8192, 8192
          %340 = vsyncadd %s333, %s339
          %s341 = smul.addr %s337, 2
          %s342 = smul.addr %s341, 64
          %s343 = scalar_lea.hbm %s1, %s342
          %s344 = sshll.u32 %s336, 4
          %s345 = int_to_ptr.vmem [resolvable:$true] %s344
          %350 = dma.hbm_to_vmem [thread:$0]  %s343, 8192, %s345, %s333, 128, 128, 8
        $region44: #{tpu_custom_call.1} parent=35 // pred_fallthru
          _
      $region36: #{tpu_custom_call.1} parent=5 // pred_fallthru
        _
      %p351 = scmp.le.s32.totalorder 1, %s28
      %p352 = scmp.lt.s32.totalorder %s28, 9
      %p353 = pnand %p351, %p352
      %p354 = pneg %p353
      // Predicated region
      $region45: #{tpu_custom_call.1} parent=5 // pred_check
        _
      $region46: #{tpu_custom_call.1} parent=5 // pred_check_branch
        %356 = sbr.rel (%p353) target = $region48
      $region47: #{tpu_custom_call.1} parent=5 // pred_region
        %s357 = ssub.s32 %s28, 1
        %s358 = sand.u32 %s55, 1
        %s359 = scalar_lea.sflag [#allocation4], %s358
        %s360 = sand.u32 %s55, 1
        %s361 = smul.addr %s360, 256
        %s362 = scalar_lea.vmem [#allocation3], %s361
        // Predicated region
        $region49: #{tpu_custom_call.1} parent=47 // pred_check
          %p363 = pneg %p68
        $region50: #{tpu_custom_call.1} parent=47 // pred_check_branch
          %365 = sbr.rel (%p363) target = $region52
        $region51: #{tpu_custom_call.1} parent=47 // pred_region
          %366 = dma.done %s359, 4096
        $region52: #{tpu_custom_call.1} parent=47 // pred_fallthru
          _
        %s367 = sand.u32 %s33, 1
        %s368 = scalar_lea.sflag [#allocation7], %s367
        %s369 = sand.u32 %s81, 1
        %s370 = smul.addr %s369, 512
        %s371 = scalar_lea.vmem [#allocation6], %s370
        // Predicated region
        $region53: #{tpu_custom_call.1} parent=47 // pred_check
          %p372 = pneg %p94
        $region54: #{tpu_custom_call.1} parent=47 // pred_check_branch
          %374 = sbr.rel (%p372) target = $region56
        $region55: #{tpu_custom_call.1} parent=47 // pred_region
          %375 = dma.done %s368, 8192
        $region56: #{tpu_custom_call.1} parent=47 // pred_fallthru
          _
        // Predicated region
        $region57: #{tpu_custom_call.1} parent=47 // pred_check
          %p376 = pneg %p136
        $region58: #{tpu_custom_call.1} parent=47 // pred_check_branch
          %378 = sbr.rel (%p376) target = $region60
        $region59: #{tpu_custom_call.1} parent=47 // pred_region
          %379 = dma.done [#allocation7], 4096
        $region60: #{tpu_custom_call.1} parent=47 // pred_fallthru
          _
        // Predicated region
        $region61: #{tpu_custom_call.1} parent=47 // pred_check
          %p380 = pneg %p178
        $region62: #{tpu_custom_call.1} parent=47 // pred_check_branch
          %382 = sbr.rel (%p380) target = $region64
        $region63: #{tpu_custom_call.1} parent=47 // pred_region
          %383 = dma.done [#allocation10], 2048
        $region64: #{tpu_custom_call.1} parent=47 // pred_fallthru
          _
        %s384 = sand.u32 %s55, 1
        %s385 = scalar_lea.sflag [#allocation4], %s384
        %s386 = sand.u32 %s55, 1
        %s387 = smul.addr %s386, 256
        %s388 = scalar_lea.vmem [#allocation3], %s387
        %p389 = pneg %p68
        %p390 = pneg %p65
        %s391 = sand.u32 %s33, 1
        %s392 = scalar_lea.sflag [#allocation7], %s391
        %s393 = sand.u32 %s81, 1
        %s394 = smul.addr %s393, 512
        %s395 = scalar_lea.vmem [#allocation6], %s394
        %p396 = pneg %p94
        %p397 = pneg %p91
        %p398 = pneg %p115
        %p399 = pneg %p112
        %p400 = pneg %p136
        %p401 = pneg %p133
        %p402 = pneg %p157
        %p403 = pneg %p154
        %p404 = pneg %p178
        %p405 = pneg %p175
        %p406 = pneg %p199
        %p407 = pneg %p196
        %p408 = pneg %p225
        %p409 = pneg %p222
        %s410 = sand.u32 %s212, 1
        %s411 = scalar_lea.sflag [#allocation5], %s410
        %s412 = sand.u32 %s212, 1
        %s413 = smul.addr %s412, 64
        %s414 = scalar_lea.vmem [#allocation11], %s413
        %p415 = pneg %p251
        %p416 = pneg %p248
        %s417 = sand.u32 %s238, 1
        %s418 = scalar_lea.sflag [#allocation13], %s417
        %s419 = sand.u32 %s238, 1
        %s420 = smul.addr %s419, 128
        %s421 = scalar_lea.vmem [#allocation12], %s420
        %s422 = smul.u32 8, %s37
        %s423 = smul.u32 4, %s38
        %s424 = smul.u32 64, %s38
        %s425 = smul.u32 8, %s37
        %s426 = smul.u32 8, %s37
        %p428 = scmp.eq.s32.totalorder %s38, 0
        // Predicated region
        $region65: #{tpu_custom_call.1} parent=47 // pred_check
          %p429 = pneg %p428
        $region66: #{tpu_custom_call.1} parent=47 // pred_check_branch
          %431 = sbr.rel (%p429) target = $region68
        $region67: #{tpu_custom_call.1} parent=47 // pred_region
          %432 = vst [vmem:[#allocation2] sm:$0xff] 0.0
          %433 = vst [vmem:[#allocation2 + $0x8] sm:$0xff] 0.0
          %434 = vst [vmem:[#allocation2 + $0x10] sm:$0xff] 0.0
          %435 = vst [vmem:[#allocation2 + $0x18] sm:$0xff] 0.0
          %436 = vst [vmem:[#allocation2 + $0x20] sm:$0xff] 0.0
          %437 = vst [vmem:[#allocation2 + $0x28] sm:$0xff] 0.0
          %438 = vst [vmem:[#allocation2 + $0x30] sm:$0xff] 0.0
          %439 = vst [vmem:[#allocation2 + $0x38] sm:$0xff] 0.0
          %440 = vst [vmem:[#allocation2 + $0x40] sm:$0xff] 0.0
          %441 = vst [vmem:[#allocation2 + $0x48] sm:$0xff] 0.0
          %442 = vst [vmem:[#allocation2 + $0x50] sm:$0xff] 0.0
          %443 = vst [vmem:[#allocation2 + $0x58] sm:$0xff] 0.0
          %444 = vst [vmem:[#allocation2 + $0x60] sm:$0xff] 0.0
          %445 = vst [vmem:[#allocation2 + $0x68] sm:$0xff] 0.0
          %446 = vst [vmem:[#allocation2 + $0x70] sm:$0xff] 0.0
          %447 = vst [vmem:[#allocation2 + $0x78] sm:$0xff] 0.0
        $region68: #{tpu_custom_call.1} parent=47 // pred_fallthru
          _
        %v448 = vld [vmem:[#allocation2] sm:$0xff]
        %v449 = vld [vmem:[#allocation2 + $0x8] sm:$0xff]
        %v450 = vld [vmem:[#allocation2 + $0x10] sm:$0xff]
        %v451 = vld [vmem:[#allocation2 + $0x18] sm:$0xff]
        %v452 = vld [vmem:[#allocation2 + $0x20] sm:$0xff]
        %v453 = vld [vmem:[#allocation2 + $0x28] sm:$0xff]
        %v454 = vld [vmem:[#allocation2 + $0x30] sm:$0xff]
        %v455 = vld [vmem:[#allocation2 + $0x38] sm:$0xff]
        %v456 = vld [vmem:[#allocation2 + $0x40] sm:$0xff]
        %v457 = vld [vmem:[#allocation2 + $0x48] sm:$0xff]
        %v458 = vld [vmem:[#allocation2 + $0x50] sm:$0xff]
        %v459 = vld [vmem:[#allocation2 + $0x58] sm:$0xff]
        %v460 = vld [vmem:[#allocation2 + $0x60] sm:$0xff]
        %v461 = vld [vmem:[#allocation2 + $0x68] sm:$0xff]
        %v462 = vld [vmem:[#allocation2 + $0x70] sm:$0xff]
        %v463 = vld [vmem:[#allocation2 + $0x78] sm:$0xff]
        %v464 = vld [vmem:[%s362] sm:$0xff]
        %v465 = vld [vmem:[%s362 + $0x8] sm:$0xff]
        %v466 = vld [vmem:[%s362 + $0x10] sm:$0xff]
        %v467 = vld [vmem:[%s362 + $0x18] sm:$0xff]
        %v468 = vld [vmem:[%s362 + $0x20] sm:$0xff]
        %v469 = vld [vmem:[%s362 + $0x28] sm:$0xff]
        %v470 = vld [vmem:[%s362 + $0x30] sm:$0xff]
        %v471 = vld [vmem:[%s362 + $0x38] sm:$0xff]
        %v472 = vld [vmem:[%s362 + $0x40] sm:$0xff]
        %v473 = vld [vmem:[%s362 + $0x48] sm:$0xff]
        %v474 = vld [vmem:[%s362 + $0x50] sm:$0xff]
        %v475 = vld [vmem:[%s362 + $0x58] sm:$0xff]
        %v476 = vld [vmem:[%s362 + $0x60] sm:$0xff]
        %v477 = vld [vmem:[%s362 + $0x68] sm:$0xff]
        %v478 = vld [vmem:[%s362 + $0x70] sm:$0xff]
        %v479 = vld [vmem:[%s362 + $0x78] sm:$0xff]
        %v480 = vld [vmem:[%s362 + $0x80] sm:$0xff]
        %v481 = vld [vmem:[%s362 + $0x88] sm:$0xff]
        %v482 = vld [vmem:[%s362 + $0x90] sm:$0xff]
        %v483 = vld [vmem:[%s362 + $0x98] sm:$0xff]
        %v484 = vld [vmem:[%s362 + $0xa0] sm:$0xff]
        %v485 = vld [vmem:[%s362 + $0xa8] sm:$0xff]
        %v486 = vld [vmem:[%s362 + $0xb0] sm:$0xff]
        %v487 = vld [vmem:[%s362 + $0xb8] sm:$0xff]
        %v488 = vld [vmem:[%s362 + $0xc0] sm:$0xff]
        %v489 = vld [vmem:[%s362 + $0xc8] sm:$0xff]
        %v490 = vld [vmem:[%s362 + $0xd0] sm:$0xff]
        %v491 = vld [vmem:[%s362 + $0xd8] sm:$0xff]
        %v492 = vld [vmem:[%s362 + $0xe0] sm:$0xff]
        %v493 = vld [vmem:[%s362 + $0xe8] sm:$0xff]
        %v494 = vld [vmem:[%s362 + $0xf0] sm:$0xff]
        %v495 = vld [vmem:[%s362 + $0xf8] sm:$0xff]
        %v496 = vpack.c.bf16 %v468, %v464
        %v497 = vpack.c.bf16 %v469, %v465
        %v498 = vpack.c.bf16 %v470, %v466
        %v499 = vpack.c.bf16 %v471, %v467
        %v500 = vpack.c.bf16 %v476, %v472
        %v501 = vpack.c.bf16 %v477, %v473
        %v502 = vpack.c.bf16 %v478, %v474
        %v503 = vpack.c.bf16 %v479, %v475
        %v504 = vpack.c.bf16 %v484, %v480
        %v505 = vpack.c.bf16 %v485, %v481
        %v506 = vpack.c.bf16 %v486, %v482
        %v507 = vpack.c.bf16 %v487, %v483
        %v508 = vpack.c.bf16 %v492, %v488
        %v509 = vpack.c.bf16 %v493, %v489
        %v510 = vpack.c.bf16 %v494, %v490
        %v511 = vpack.c.bf16 %v495, %v491
        %v512 = vld [vmem:[%s371] sm:$0xff]
        %v513 = vld [vmem:[%s371 + $0x8] sm:$0xff]
        %v514 = vld [vmem:[%s371 + $0x10] sm:$0xff]
        %v515 = vld [vmem:[%s371 + $0x18] sm:$0xff]
        %v516 = vld [vmem:[%s371 + $0x20] sm:$0xff]
        %v517 = vld [vmem:[%s371 + $0x28] sm:$0xff]
        %v518 = vld [vmem:[%s371 + $0x30] sm:$0xff]
        %v519 = vld [vmem:[%s371 + $0x38] sm:$0xff]
        %v520 = vld [vmem:[%s371 + $0x40] sm:$0xff]
        %v521 = vld [vmem:[%s371 + $0x48] sm:$0xff]
        %v522 = vld [vmem:[%s371 + $0x50] sm:$0xff]
        %v523 = vld [vmem:[%s371 + $0x58] sm:$0xff]
        %v524 = vld [vmem:[%s371 + $0x60] sm:$0xff]
        %v525 = vld [vmem:[%s371 + $0x68] sm:$0xff]
        %v526 = vld [vmem:[%s371 + $0x70] sm:$0xff]
        %v527 = vld [vmem:[%s371 + $0x78] sm:$0xff]
        %v528 = vld [vmem:[%s371 + $0x80] sm:$0xff]
        %v529 = vld [vmem:[%s371 + $0x88] sm:$0xff]
        %v530 = vld [vmem:[%s371 + $0x90] sm:$0xff]
        %v531 = vld [vmem:[%s371 + $0x98] sm:$0xff]
        %v532 = vld [vmem:[%s371 + $0xa0] sm:$0xff]
        %v533 = vld [vmem:[%s371 + $0xa8] sm:$0xff]
        %v534 = vld [vmem:[%s371 + $0xb0] sm:$0xff]
        %v535 = vld [vmem:[%s371 + $0xb8] sm:$0xff]
        %v536 = vld [vmem:[%s371 + $0xc0] sm:$0xff]
        %v537 = vld [vmem:[%s371 + $0xc8] sm:$0xff]
        %v538 = vld [vmem:[%s371 + $0xd0] sm:$0xff]
        %v539 = vld [vmem:[%s371 + $0xd8] sm:$0xff]
        %v540 = vld [vmem:[%s371 + $0xe0] sm:$0xff]
        %v541 = vld [vmem:[%s371 + $0xe8] sm:$0xff]
        %v542 = vld [vmem:[%s371 + $0xf0] sm:$0xff]
        %v543 = vld [vmem:[%s371 + $0xf8] sm:$0xff]
        %v544 = vld [vmem:[%s371 + $0x100] sm:$0xff]
        %v545 = vld [vmem:[%s371 + $0x108] sm:$0xff]
        %v546 = vld [vmem:[%s371 + $0x110] sm:$0xff]
        %v547 = vld [vmem:[%s371 + $0x118] sm:$0xff]
        %v548 = vld [vmem:[%s371 + $0x120] sm:$0xff]
        %v549 = vld [vmem:[%s371 + $0x128] sm:$0xff]
        %v550 = vld [vmem:[%s371 + $0x130] sm:$0xff]
        %v551 = vld [vmem:[%s371 + $0x138] sm:$0xff]
        %v552 = vld [vmem:[%s371 + $0x140] sm:$0xff]
        %v553 = vld [vmem:[%s371 + $0x148] sm:$0xff]
        %v554 = vld [vmem:[%s371 + $0x150] sm:$0xff]
        %v555 = vld [vmem:[%s371 + $0x158] sm:$0xff]
        %v556 = vld [vmem:[%s371 + $0x160] sm:$0xff]
        %v557 = vld [vmem:[%s371 + $0x168] sm:$0xff]
        %v558 = vld [vmem:[%s371 + $0x170] sm:$0xff]
        %v559 = vld [vmem:[%s371 + $0x178] sm:$0xff]
        %v560 = vld [vmem:[%s371 + $0x180] sm:$0xff]
        %v561 = vld [vmem:[%s371 + $0x188] sm:$0xff]
        %v562 = vld [vmem:[%s371 + $0x190] sm:$0xff]
        %v563 = vld [vmem:[%s371 + $0x198] sm:$0xff]
        %v564 = vld [vmem:[%s371 + $0x1a0] sm:$0xff]
        %v565 = vld [vmem:[%s371 + $0x1a8] sm:$0xff]
        %v566 = vld [vmem:[%s371 + $0x1b0] sm:$0xff]
        %v567 = vld [vmem:[%s371 + $0x1b8] sm:$0xff]
        %v568 = vld [vmem:[%s371 + $0x1c0] sm:$0xff]
        %v569 = vld [vmem:[%s371 + $0x1c8] sm:$0xff]
        %v570 = vld [vmem:[%s371 + $0x1d0] sm:$0xff]
        %v571 = vld [vmem:[%s371 + $0x1d8] sm:$0xff]
        %v572 = vld [vmem:[%s371 + $0x1e0] sm:$0xff]
        %v573 = vld [vmem:[%s371 + $0x1e8] sm:$0xff]
        %v574 = vld [vmem:[%s371 + $0x1f0] sm:$0xff]
        %v575 = vld [vmem:[%s371 + $0x1f8] sm:$0xff]
        %v640 = vunpack.c.l.b16 %v512
        %v641 = vunpack.c.h.b16 %v512
        %v642 = vunpack.c.l.b16 %v513
        %v643 = vunpack.c.h.b16 %v513
        %v644 = vunpack.c.l.b16 %v514
        %v645 = vunpack.c.h.b16 %v514
        %v646 = vunpack.c.l.b16 %v515
        %v647 = vunpack.c.h.b16 %v515
        %v648 = vunpack.c.l.b16 %v516
        %v649 = vunpack.c.h.b16 %v516
        %v650 = vunpack.c.l.b16 %v517
        %v651 = vunpack.c.h.b16 %v517
        %v652 = vunpack.c.l.b16 %v518
        %v653 = vunpack.c.h.b16 %v518
        %v654 = vunpack.c.l.b16 %v519
        %v655 = vunpack.c.h.b16 %v519
        %v656 = vunpack.c.l.b16 %v520
        %v657 = vunpack.c.h.b16 %v520
        %v658 = vunpack.c.l.b16 %v521
        %v659 = vunpack.c.h.b16 %v521
        %v660 = vunpack.c.l.b16 %v522
        %v661 = vunpack.c.h.b16 %v522
        %v662 = vunpack.c.l.b16 %v523
        %v663 = vunpack.c.h.b16 %v523
        %v664 = vunpack.c.l.b16 %v524
        %v665 = vunpack.c.h.b16 %v524
        %v666 = vunpack.c.l.b16 %v525
        %v667 = vunpack.c.h.b16 %v525
        %v668 = vunpack.c.l.b16 %v526
        %v669 = vunpack.c.h.b16 %v526
        %v670 = vunpack.c.l.b16 %v527
        %v671 = vunpack.c.h.b16 %v527
        %v672 = vunpack.c.l.b16 %v528
        %v673 = vunpack.c.h.b16 %v528
        %v674 = vunpack.c.l.b16 %v529
        %v675 = vunpack.c.h.b16 %v529
        %v676 = vunpack.c.l.b16 %v530
        %v677 = vunpack.c.h.b16 %v530
        %v678 = vunpack.c.l.b16 %v531
        %v679 = vunpack.c.h.b16 %v531
        %v680 = vunpack.c.l.b16 %v532
        %v681 = vunpack.c.h.b16 %v532
        %v682 = vunpack.c.l.b16 %v533
        %v683 = vunpack.c.h.b16 %v533
        %v684 = vunpack.c.l.b16 %v534
        %v685 = vunpack.c.h.b16 %v534
        %v686 = vunpack.c.l.b16 %v535
        %v687 = vunpack.c.h.b16 %v535
        %v688 = vunpack.c.l.b16 %v536
        %v689 = vunpack.c.h.b16 %v536
        %v690 = vunpack.c.l.b16 %v537
        %v691 = vunpack.c.h.b16 %v537
        %v692 = vunpack.c.l.b16 %v538
        %v693 = vunpack.c.h.b16 %v538
        %v694 = vunpack.c.l.b16 %v539
        %v695 = vunpack.c.h.b16 %v539
        %v696 = vunpack.c.l.b16 %v540
        %v697 = vunpack.c.h.b16 %v540
        %v698 = vunpack.c.l.b16 %v541
        %v699 = vunpack.c.h.b16 %v541
        %v700 = vunpack.c.l.b16 %v542
        %v701 = vunpack.c.h.b16 %v542
        %v702 = vunpack.c.l.b16 %v543
        %v703 = vunpack.c.h.b16 %v543
        %v704 = vunpack.c.l.b16 %v544
        %v705 = vunpack.c.h.b16 %v544
        %v706 = vunpack.c.l.b16 %v545
        %v707 = vunpack.c.h.b16 %v545
        %v708 = vunpack.c.l.b16 %v546
        %v709 = vunpack.c.h.b16 %v546
        %v710 = vunpack.c.l.b16 %v547
        %v711 = vunpack.c.h.b16 %v547
        %v712 = vunpack.c.l.b16 %v548
        %v713 = vunpack.c.h.b16 %v548
        %v714 = vunpack.c.l.b16 %v549
        %v715 = vunpack.c.h.b16 %v549
        %v716 = vunpack.c.l.b16 %v550
        %v717 = vunpack.c.h.b16 %v550
        %v718 = vunpack.c.l.b16 %v551
        %v719 = vunpack.c.h.b16 %v551
        %v720 = vunpack.c.l.b16 %v552
        %v721 = vunpack.c.h.b16 %v552
        %v722 = vunpack.c.l.b16 %v553
        %v723 = vunpack.c.h.b16 %v553
        %v724 = vunpack.c.l.b16 %v554
        %v725 = vunpack.c.h.b16 %v554
        %v726 = vunpack.c.l.b16 %v555
        %v727 = vunpack.c.h.b16 %v555
        %v728 = vunpack.c.l.b16 %v556
        %v729 = vunpack.c.h.b16 %v556
        %v730 = vunpack.c.l.b16 %v557
        %v731 = vunpack.c.h.b16 %v557
        %v732 = vunpack.c.l.b16 %v558
        %v733 = vunpack.c.h.b16 %v558
        %v734 = vunpack.c.l.b16 %v559
        %v735 = vunpack.c.h.b16 %v559
        %v736 = vunpack.c.l.b16 %v560
        %v737 = vunpack.c.h.b16 %v560
        %v738 = vunpack.c.l.b16 %v561
        %v739 = vunpack.c.h.b16 %v561
        %v740 = vunpack.c.l.b16 %v562
        %v741 = vunpack.c.h.b16 %v562
        %v742 = vunpack.c.l.b16 %v563
        %v743 = vunpack.c.h.b16 %v563
        %v744 = vunpack.c.l.b16 %v564
        %v745 = vunpack.c.h.b16 %v564
        %v746 = vunpack.c.l.b16 %v565
        %v747 = vunpack.c.h.b16 %v565
        %v748 = vunpack.c.l.b16 %v566
        %v749 = vunpack.c.h.b16 %v566
        %v750 = vunpack.c.l.b16 %v567
        %v751 = vunpack.c.h.b16 %v567
        %v752 = vunpack.c.l.b16 %v568
        %v753 = vunpack.c.h.b16 %v568
        %v754 = vunpack.c.l.b16 %v569
        %v755 = vunpack.c.h.b16 %v569
        %v756 = vunpack.c.l.b16 %v570
        %v757 = vunpack.c.h.b16 %v570
        %v758 = vunpack.c.l.b16 %v571
        %v759 = vunpack.c.h.b16 %v571
        %v760 = vunpack.c.l.b16 %v572
        %v761 = vunpack.c.h.b16 %v572
        %v762 = vunpack.c.l.b16 %v573
        %v763 = vunpack.c.h.b16 %v573
        %v764 = vunpack.c.l.b16 %v574
        %v765 = vunpack.c.h.b16 %v574
        %v766 = vunpack.c.l.b16 %v575
        %v767 = vunpack.c.h.b16 %v575
        %v768 = vpack.c.b16 %v642, %v640
        %v769 = vpack.c.b16 %v643, %v641
        %v770 = vpack.c.b16 %v646, %v644
        %v771 = vpack.c.b16 %v647, %v645
        %v772 = vpack.c.b16 %v650, %v648
        %v773 = vpack.c.b16 %v651, %v649
        %v774 = vpack.c.b16 %v654, %v652
        %v775 = vpack.c.b16 %v655, %v653
        %v776 = vpack.c.b16 %v658, %v656
        %v777 = vpack.c.b16 %v659, %v657
        %v778 = vpack.c.b16 %v662, %v660
        %v779 = vpack.c.b16 %v663, %v661
        %v780 = vpack.c.b16 %v666, %v664
        %v781 = vpack.c.b16 %v667, %v665
        %v782 = vpack.c.b16 %v670, %v668
        %v783 = vpack.c.b16 %v671, %v669
        %v784 = vpack.c.b16 %v674, %v672
        %v785 = vpack.c.b16 %v675, %v673
        %v786 = vpack.c.b16 %v678, %v676
        %v787 = vpack.c.b16 %v679, %v677
        %v788 = vpack.c.b16 %v682, %v680
        %v789 = vpack.c.b16 %v683, %v681
        %v790 = vpack.c.b16 %v686, %v684
        %v791 = vpack.c.b16 %v687, %v685
        %v792 = vpack.c.b16 %v690, %v688
        %v793 = vpack.c.b16 %v691, %v689
        %v794 = vpack.c.b16 %v694, %v692
        %v795 = vpack.c.b16 %v695, %v693
        %v796 = vpack.c.b16 %v698, %v696
        %v797 = vpack.c.b16 %v699, %v697
        %v798 = vpack.c.b16 %v702, %v700
        %v799 = vpack.c.b16 %v703, %v701
        %v800 = vpack.c.b16 %v706, %v704
        %v801 = vpack.c.b16 %v707, %v705
        %v802 = vpack.c.b16 %v710, %v708
        %v803 = vpack.c.b16 %v711, %v709
        %v804 = vpack.c.b16 %v714, %v712
        %v805 = vpack.c.b16 %v715, %v713
        %v806 = vpack.c.b16 %v718, %v716
        %v807 = vpack.c.b16 %v719, %v717
        %v808 = vpack.c.b16 %v722, %v720
        %v809 = vpack.c.b16 %v723, %v721
        %v810 = vpack.c.b16 %v726, %v724
        %v811 = vpack.c.b16 %v727, %v725
        %v812 = vpack.c.b16 %v730, %v728
        %v813 = vpack.c.b16 %v731, %v729
        %v814 = vpack.c.b16 %v734, %v732
        %v815 = vpack.c.b16 %v735, %v733
        %v816 = vpack.c.b16 %v738, %v736
        %v817 = vpack.c.b16 %v739, %v737
        %v818 = vpack.c.b16 %v742, %v740
        %v819 = vpack.c.b16 %v743, %v741
        %v820 = vpack.c.b16 %v746, %v744
        %v821 = vpack.c.b16 %v747, %v745
        %v822 = vpack.c.b16 %v750, %v748
        %v823 = vpack.c.b16 %v751, %v749
        %v824 = vpack.c.b16 %v754, %v752
        %v825 = vpack.c.b16 %v755, %v753
        %v826 = vpack.c.b16 %v758, %v756
        %v827 = vpack.c.b16 %v759, %v757
        %v828 = vpack.c.b16 %v762, %v760
        %v829 = vpack.c.b16 %v763, %v761
        %v830 = vpack.c.b16 %v766, %v764
        %v831 = vpack.c.b16 %v767, %v765
        %896 = vmatprep.subr.bf16.mxu0 %v769
        %897 = vmatpush1.bf16.msra.mxu0 %v768
        %898 = vmatprep.subr.bf16.mxu0 %v771
        %899 = vmatpush1.bf16.msra.mxu0 %v770
        %900 = vmatprep.subr.bf16.mxu0 %v773
        %901 = vmatpush1.bf16.msra.mxu0 %v772
        %902 = vmatprep.subr.bf16.mxu0 %v775
        %903 = vmatpush1.bf16.msra.mxu0 %v774
        %904 = vmatprep.subr.bf16.mxu0 %v777
        %905 = vmatpush1.bf16.msra.mxu0 %v776
        %906 = vmatprep.subr.bf16.mxu0 %v779
        %907 = vmatpush1.bf16.msra.mxu0 %v778
        %908 = vmatprep.subr.bf16.mxu0 %v781
        %909 = vmatpush1.bf16.msra.mxu0 %v780
        %910 = vmatprep.subr.bf16.mxu0 %v783
        %911 = vmatpush1.bf16.msra.mxu0 %v782
        %912 = vmatprep.subr.bf16.mxu0 %v785
        %913 = vmatpush1.bf16.msra.mxu0 %v784
        %914 = vmatprep.subr.bf16.mxu0 %v787
        %915 = vmatpush1.bf16.msra.mxu0 %v786
        %916 = vmatprep.subr.bf16.mxu0 %v789
        %917 = vmatpush1.bf16.msra.mxu0 %v788
        %918 = vmatprep.subr.bf16.mxu0 %v791
        %919 = vmatpush1.bf16.msra.mxu0 %v790
        %920 = vmatprep.subr.bf16.mxu0 %v793
        %921 = vmatpush1.bf16.msra.mxu0 %v792
        %922 = vmatprep.subr.bf16.mxu0 %v795
        %923 = vmatpush1.bf16.msra.mxu0 %v794
        %924 = vmatprep.subr.bf16.mxu0 %v797
        %925 = vmatpush1.bf16.msra.mxu0 %v796
        %926 = vmatprep.subr.bf16.mxu0 %v799
        %927 = vmatpush1.bf16.msra.mxu0 %v798
        %928 = vmatprep.mubr.bf16.mxu0 %v497
        %929 = vmatmul.mubr.bf16.gmra.mrb[0].mxu0 %v496
        %v930 = vpop.f32.mrb[0].mxu0
        %v931 = vadd.f32 0.0, %v930
        %v932 = vpop.f32.mrb[0].mxu0
        %v933 = vadd.f32 0.0, %v932
        %v934 = vpop.f32.mrb[0].mxu0
        %v935 = vadd.f32 0.0, %v934
        %v936 = vpop.f32.mrb[0].mxu0
        %v937 = vadd.f32 0.0, %v936
        %938 = vmatprep.mubr.bf16.mxu0 %v501
        %939 = vmatmul.mubr.bf16.gmra.mrb[0].mxu0 %v500
        %v940 = vpop.f32.mrb[0].mxu0
        %v941 = vadd.f32 0.0, %v940
        %v942 = vpop.f32.mrb[0].mxu0
        %v943 = vadd.f32 0.0, %v942
        %v944 = vpop.f32.mrb[0].mxu0
        %v945 = vadd.f32 0.0, %v944
        %v946 = vpop.f32.mrb[0].mxu0
        %v947 = vadd.f32 0.0, %v946
        %948 = vmatprep.mubr.bf16.mxu0 %v505
        %949 = vmatmul.mubr.bf16.gmra.mrb[0].mxu0 %v504
        %v950 = vpop.f32.mrb[0].mxu0
        %v951 = vadd.f32 0.0, %v950
        %v952 = vpop.f32.mrb[0].mxu0
        %v953 = vadd.f32 0.0, %v952
        %v954 = vpop.f32.mrb[0].mxu0
        %v955 = vadd.f32 0.0, %v954
        %v956 = vpop.f32.mrb[0].mxu0
        %v957 = vadd.f32 0.0, %v956
        %958 = vmatprep.mubr.bf16.mxu0 %v509
        %959 = vmatmul.mubr.bf16.gmra.mrb[0].mxu0 %v508
        %v960 = vpop.f32.mrb[0].mxu0
        %v961 = vadd.f32 0.0, %v960
        %v962 = vpop.f32.mrb[0].mxu0
        %v963 = vadd.f32 0.0, %v962
        %v964 = vpop.f32.mrb[0].mxu0
        %v965 = vadd.f32 0.0, %v964
        %v966 = vpop.f32.mrb[0].mxu0
        %v967 = vadd.f32 0.0, %v966
        %968 = vdwg.mxu0
        %969 = vmatprep.subr.bf16.mxu0 %v801
        %970 = vmatpush1.bf16.msra.mxu0 %v800
        %971 = vmatprep.subr.bf16.mxu0 %v803
        %972 = vmatpush1.bf16.msra.mxu0 %v802
        %973 = vmatprep.subr.bf16.mxu0 %v805
        %974 = vmatpush1.bf16.msra.mxu0 %v804
        %975 = vmatprep.subr.bf16.mxu0 %v807
        %976 = vmatpush1.bf16.msra.mxu0 %v806
        %977 = vmatprep.subr.bf16.mxu0 %v809
        %978 = vmatpush1.bf16.msra.mxu0 %v808
        %979 = vmatprep.subr.bf16.mxu0 %v811
        %980 = vmatpush1.bf16.msra.mxu0 %v810
        %981 = vmatprep.subr.bf16.mxu0 %v813
        %982 = vmatpush1.bf16.msra.mxu0 %v812
        %983 = vmatprep.subr.bf16.mxu0 %v815
        %984 = vmatpush1.bf16.msra.mxu0 %v814
        %985 = vmatprep.subr.bf16.mxu0 %v817
        %986 = vmatpush1.bf16.msra.mxu0 %v816
        %987 = vmatprep.subr.bf16.mxu0 %v819
        %988 = vmatpush1.bf16.msra.mxu0 %v818
        %989 = vmatprep.subr.bf16.mxu0 %v821
        %990 = vmatpush1.bf16.msra.mxu0 %v820
        %991 = vmatprep.subr.bf16.mxu0 %v823
        %992 = vmatpush1.bf16.msra.mxu0 %v822
        %993 = vmatprep.subr.bf16.mxu0 %v825
        %994 = vmatpush1.bf16.msra.mxu0 %v824
        %995 = vmatprep.subr.bf16.mxu0 %v827
        %996 = vmatpush1.bf16.msra.mxu0 %v826
        %997 = vmatprep.subr.bf16.mxu0 %v829
        %998 = vmatpush1.bf16.msra.mxu0 %v828
        %999 = vmatprep.subr.bf16.mxu0 %v831
        %1000 = vmatpush1.bf16.msra.mxu0 %v830
        %1001 = vmatprep.mubr.bf16.mxu0 %v499
        %1002 = vmatmul.mubr.bf16.gmra.mrb[0].mxu0 %v498
        %v1003 = vpop.f32.mrb[0].mxu0
        %v1004 = vadd.f32 %v931, %v1003
        %v1005 = vpop.f32.mrb[0].mxu0
        %v1006 = vadd.f32 %v933, %v1005
        %v1007 = vpop.f32.mrb[0].mxu0
        %v1008 = vadd.f32 %v935, %v1007
        %v1009 = vpop.f32.mrb[0].mxu0
        %v1010 = vadd.f32 %v937, %v1009
        %1011 = vmatprep.mubr.bf16.mxu0 %v503
        %1012 = vmatmul.mubr.bf16.gmra.mrb[0].mxu0 %v502
        %v1013 = vpop.f32.mrb[0].mxu0
        %v1014 = vadd.f32 %v941, %v1013
        %v1015 = vpop.f32.mrb[0].mxu0
        %v1016 = vadd.f32 %v943, %v1015
        %v1017 = vpop.f32.mrb[0].mxu0
        %v1018 = vadd.f32 %v945, %v1017
        %v1019 = vpop.f32.mrb[0].mxu0
        %v1020 = vadd.f32 %v947, %v1019
        %1021 = vmatprep.mubr.bf16.mxu0 %v507
        %1022 = vmatmul.mubr.bf16.gmra.mrb[0].mxu0 %v506
        %v1023 = vpop.f32.mrb[0].mxu0
        %v1024 = vadd.f32 %v951, %v1023
        %v1025 = vpop.f32.mrb[0].mxu0
        %v1026 = vadd.f32 %v953, %v1025
        %v1027 = vpop.f32.mrb[0].mxu0
        %v1028 = vadd.f32 %v955, %v1027
        %v1029 = vpop.f32.mrb[0].mxu0
        %v1030 = vadd.f32 %v957, %v1029
        %1031 = vmatprep.mubr.bf16.mxu0 %v511
        %1032 = vmatmul.mubr.bf16.gmra.mrb[0].mxu0 %v510
        %v1033 = vpop.f32.mrb[0].mxu0
        %v1034 = vadd.f32 %v961, %v1033
        %v1035 = vpop.f32.mrb[0].mxu0
        %v1036 = vadd.f32 %v963, %v1035
        %v1037 = vpop.f32.mrb[0].mxu0
        %v1038 = vadd.f32 %v965, %v1037
        %v1039 = vpop.f32.mrb[0].mxu0
        %v1040 = vadd.f32 %v967, %v1039
        %1041 = vdwg.mxu0
        %v1042 = vadd.f32 %v448, %v1004
        %v1043 = vadd.f32 %v449, %v1006
        %v1044 = vadd.f32 %v450, %v1008
        %v1045 = vadd.f32 %v451, %v1010
        %v1046 = vadd.f32 %v452, %v1014
        %v1047 = vadd.f32 %v453, %v1016
        %v1048 = vadd.f32 %v454, %v1018
        %v1049 = vadd.f32 %v455, %v1020
        %v1050 = vadd.f32 %v456, %v1024
        %v1051 = vadd.f32 %v457, %v1026
        %v1052 = vadd.f32 %v458, %v1028
        %v1053 = vadd.f32 %v459, %v1030
        %v1054 = vadd.f32 %v460, %v1034
        %v1055 = vadd.f32 %v461, %v1036
        %v1056 = vadd.f32 %v462, %v1038
        %v1057 = vadd.f32 %v463, %v1040
        %1058 = vst [vmem:[#allocation2] sm:$0xff] %v1042
        %1059 = vst [vmem:[#allocation2 + $0x8] sm:$0xff] %v1043
        %1060 = vst [vmem:[#allocation2 + $0x10] sm:$0xff] %v1044
        %1061 = vst [vmem:[#allocation2 + $0x18] sm:$0xff] %v1045
        %1062 = vst [vmem:[#allocation2 + $0x20] sm:$0xff] %v1046
        %1063 = vst [vmem:[#allocation2 + $0x28] sm:$0xff] %v1047
        %1064 = vst [vmem:[#allocation2 + $0x30] sm:$0xff] %v1048
        %1065 = vst [vmem:[#allocation2 + $0x38] sm:$0xff] %v1049
        %1066 = vst [vmem:[#allocation2 + $0x40] sm:$0xff] %v1050
        %1067 = vst [vmem:[#allocation2 + $0x48] sm:$0xff] %v1051
        %1068 = vst [vmem:[#allocation2 + $0x50] sm:$0xff] %v1052
        %1069 = vst [vmem:[#allocation2 + $0x58] sm:$0xff] %v1053
        %1070 = vst [vmem:[#allocation2 + $0x60] sm:$0xff] %v1054
        %1071 = vst [vmem:[#allocation2 + $0x68] sm:$0xff] %v1055
        %1072 = vst [vmem:[#allocation2 + $0x70] sm:$0xff] %v1056
        %1073 = vst [vmem:[#allocation2 + $0x78] sm:$0xff] %v1057
        %p1074 = scmp.eq.s32.totalorder %s38, 3
        // Predicated region
        $region69: #{tpu_custom_call.1} parent=47 // pred_check
          %p1075 = pneg %p1074
        $region70: #{tpu_custom_call.1} parent=47 // pred_check_branch
          %1077 = sbr.rel (%p1075) target = $region72
        $region71: #{tpu_custom_call.1} parent=47 // pred_region
          %v1078 = vld [vmem:[#allocation2] sm:$0xff]
          %v1079 = vld [vmem:[#allocation2 + $0x8] sm:$0xff]
          %v1080 = vld [vmem:[#allocation2 + $0x10] sm:$0xff]
          %v1081 = vld [vmem:[#allocation2 + $0x18] sm:$0xff]
          %v1082 = vld [vmem:[#allocation2 + $0x20] sm:$0xff]
          %v1083 = vld [vmem:[#allocation2 + $0x28] sm:$0xff]
          %v1084 = vld [vmem:[#allocation2 + $0x30] sm:$0xff]
          %v1085 = vld [vmem:[#allocation2 + $0x38] sm:$0xff]
          %v1086 = vld [vmem:[#allocation2 + $0x40] sm:$0xff]
          %v1087 = vld [vmem:[#allocation2 + $0x48] sm:$0xff]
          %v1088 = vld [vmem:[#allocation2 + $0x50] sm:$0xff]
          %v1089 = vld [vmem:[#allocation2 + $0x58] sm:$0xff]
          %v1090 = vld [vmem:[#allocation2 + $0x60] sm:$0xff]
          %v1091 = vld [vmem:[#allocation2 + $0x68] sm:$0xff]
          %v1092 = vld [vmem:[#allocation2 + $0x70] sm:$0xff]
          %v1093 = vld [vmem:[#allocation2 + $0x78] sm:$0xff]
          %v1094 = vld [vmem:[%s2] sm:$0x3]
          %v1096 = vlaneseq
          %v1097 = vshrl.u32 %v1096, 7
          %v1098 = vsub.s32 0, %v1097
          %v1099 = vrot.slane %v1094, %v1098
          %v1100 = vlaneseq
          %v1101 = vshrl.u32 %v1100, 7
          %v1102 = vsub.s32 1, %v1101
          %v1103 = vrot.slane %v1094, %v1102
          %v1106 = vadd.f32 %v1078, %v1099
          %v1107 = vadd.f32 %v1079, %v1103
          %v1108 = vadd.f32 %v1080, %v1099
          %v1109 = vadd.f32 %v1081, %v1103
          %v1110 = vadd.f32 %v1082, %v1099
          %v1111 = vadd.f32 %v1083, %v1103
          %v1112 = vadd.f32 %v1084, %v1099
          %v1113 = vadd.f32 %v1085, %v1103
          %v1114 = vadd.f32 %v1086, %v1099
          %v1115 = vadd.f32 %v1087, %v1103
          %v1116 = vadd.f32 %v1088, %v1099
          %v1117 = vadd.f32 %v1089, %v1103
          %v1118 = vadd.f32 %v1090, %v1099
          %v1119 = vadd.f32 %v1091, %v1103
          %v1120 = vadd.f32 %v1092, %v1099
          %v1121 = vadd.f32 %v1093, %v1103
          %v1122 = vpack.c.bf16 %v1108, %v1106
          %v1123 = vpack.c.bf16 %v1109, %v1107
          %v1124 = vpack.c.bf16 %v1112, %v1110
          %v1125 = vpack.c.bf16 %v1113, %v1111
          %v1126 = vpack.c.bf16 %v1116, %v1114
          %v1127 = vpack.c.bf16 %v1117, %v1115
          %v1128 = vpack.c.bf16 %v1120, %v1118
          %v1129 = vpack.c.bf16 %v1121, %v1119
          %v1130 = vld [vmem:[#allocation8] sm:$0xff]
          %v1131 = vld [vmem:[#allocation8 + $0x8] sm:$0xff]
          %v1132 = vld [vmem:[#allocation8 + $0x10] sm:$0xff]
          %v1133 = vld [vmem:[#allocation8 + $0x18] sm:$0xff]
          %v1134 = vld [vmem:[#allocation8 + $0x20] sm:$0xff]
          %v1135 = vld [vmem:[#allocation8 + $0x28] sm:$0xff]
          %v1136 = vld [vmem:[#allocation8 + $0x30] sm:$0xff]
          %v1137 = vld [vmem:[#allocation8 + $0x38] sm:$0xff]
          %v1138 = vld [vmem:[#allocation8 + $0x40] sm:$0xff]
          %v1139 = vld [vmem:[#allocation8 + $0x48] sm:$0xff]
          %v1140 = vld [vmem:[#allocation8 + $0x50] sm:$0xff]
          %v1141 = vld [vmem:[#allocation8 + $0x58] sm:$0xff]
          %v1142 = vld [vmem:[#allocation8 + $0x60] sm:$0xff]
          %v1143 = vld [vmem:[#allocation8 + $0x68] sm:$0xff]
          %v1144 = vld [vmem:[#allocation8 + $0x70] sm:$0xff]
          %v1145 = vld [vmem:[#allocation8 + $0x78] sm:$0xff]
          %v1146 = vld [vmem:[#allocation8 + $0x80] sm:$0xff]
          %v1147 = vld [vmem:[#allocation8 + $0x88] sm:$0xff]
          %v1148 = vld [vmem:[#allocation8 + $0x90] sm:$0xff]
          %v1149 = vld [vmem:[#allocation8 + $0x98] sm:$0xff]
          %v1150 = vld [vmem:[#allocation8 + $0xa0] sm:$0xff]
          %v1151 = vld [vmem:[#allocation8 + $0xa8] sm:$0xff]
          %v1152 = vld [vmem:[#allocation8 + $0xb0] sm:$0xff]
          %v1153 = vld [vmem:[#allocation8 + $0xb8] sm:$0xff]
          %v1154 = vld [vmem:[#allocation8 + $0xc0] sm:$0xff]
          %v1155 = vld [vmem:[#allocation8 + $0xc8] sm:$0xff]
          %v1156 = vld [vmem:[#allocation8 + $0xd0] sm:$0xff]
          %v1157 = vld [vmem:[#allocation8 + $0xd8] sm:$0xff]
          %v1158 = vld [vmem:[#allocation8 + $0xe0] sm:$0xff]
          %v1159 = vld [vmem:[#allocation8 + $0xe8] sm:$0xff]
          %v1160 = vld [vmem:[#allocation8 + $0xf0] sm:$0xff]
          %v1161 = vld [vmem:[#allocation8 + $0xf8] sm:$0xff]
          %v1162 = vld [vmem:[%s4] sm:$0x3]
          %v1164 = vlaneseq
          %v1165 = vshrl.u32 %v1164, 7
          %v1166 = vsub.s32 0, %v1165
          %v1167 = vrot.slane %v1162, %v1166
          %v1168 = vlaneseq
          %v1169 = vshrl.u32 %v1168, 7
          %v1170 = vsub.s32 1, %v1169
          %v1171 = vrot.slane %v1162, %v1170
          %v1206 = vunpack.c.l.b16 %v1130
          %v1207 = vunpack.c.h.b16 %v1130
          %v1208 = vunpack.c.l.b16 %v1131
          %v1209 = vunpack.c.h.b16 %v1131
          %v1210 = vunpack.c.l.b16 %v1132
          %v1211 = vunpack.c.h.b16 %v1132
          %v1212 = vunpack.c.l.b16 %v1133
          %v1213 = vunpack.c.h.b16 %v1133
          %v1214 = vunpack.c.l.b16 %v1134
          %v1215 = vunpack.c.h.b16 %v1134
          %v1216 = vunpack.c.l.b16 %v1135
          %v1217 = vunpack.c.h.b16 %v1135
          %v1218 = vunpack.c.l.b16 %v1136
          %v1219 = vunpack.c.h.b16 %v1136
          %v1220 = vunpack.c.l.b16 %v1137
          %v1221 = vunpack.c.h.b16 %v1137
          %v1222 = vunpack.c.l.b16 %v1138
          %v1223 = vunpack.c.h.b16 %v1138
          %v1224 = vunpack.c.l.b16 %v1139
          %v1225 = vunpack.c.h.b16 %v1139
          %v1226 = vunpack.c.l.b16 %v1140
          %v1227 = vunpack.c.h.b16 %v1140
          %v1228 = vunpack.c.l.b16 %v1141
          %v1229 = vunpack.c.h.b16 %v1141
          %v1230 = vunpack.c.l.b16 %v1142
          %v1231 = vunpack.c.h.b16 %v1142
          %v1232 = vunpack.c.l.b16 %v1143
          %v1233 = vunpack.c.h.b16 %v1143
          %v1234 = vunpack.c.l.b16 %v1144
          %v1235 = vunpack.c.h.b16 %v1144
          %v1236 = vunpack.c.l.b16 %v1145
          %v1237 = vunpack.c.h.b16 %v1145
          %v1238 = vunpack.c.l.b16 %v1146
          %v1239 = vunpack.c.h.b16 %v1146
          %v1240 = vunpack.c.l.b16 %v1147
          %v1241 = vunpack.c.h.b16 %v1147
          %v1242 = vunpack.c.l.b16 %v1148
          %v1243 = vunpack.c.h.b16 %v1148
          %v1244 = vunpack.c.l.b16 %v1149
          %v1245 = vunpack.c.h.b16 %v1149
          %v1246 = vunpack.c.l.b16 %v1150
          %v1247 = vunpack.c.h.b16 %v1150
          %v1248 = vunpack.c.l.b16 %v1151
          %v1249 = vunpack.c.h.b16 %v1151
          %v1250 = vunpack.c.l.b16 %v1152
          %v1251 = vunpack.c.h.b16 %v1152
          %v1252 = vunpack.c.l.b16 %v1153
          %v1253 = vunpack.c.h.b16 %v1153
          %v1254 = vunpack.c.l.b16 %v1154
          %v1255 = vunpack.c.h.b16 %v1154
          %v1256 = vunpack.c.l.b16 %v1155
          %v1257 = vunpack.c.h.b16 %v1155
          %v1258 = vunpack.c.l.b16 %v1156
          %v1259 = vunpack.c.h.b16 %v1156
          %v1260 = vunpack.c.l.b16 %v1157
          %v1261 = vunpack.c.h.b16 %v1157
          %v1262 = vunpack.c.l.b16 %v1158
          %v1263 = vunpack.c.h.b16 %v1158
          %v1264 = vunpack.c.l.b16 %v1159
          %v1265 = vunpack.c.h.b16 %v1159
          %v1266 = vunpack.c.l.b16 %v1160
          %v1267 = vunpack.c.h.b16 %v1160
          %v1268 = vunpack.c.l.b16 %v1161
          %v1269 = vunpack.c.h.b16 %v1161
          %v1270 = vpack.c.b16 %v1208, %v1206
          %v1271 = vpack.c.b16 %v1209, %v1207
          %v1272 = vpack.c.b16 %v1212, %v1210
          %v1273 = vpack.c.b16 %v1213, %v1211
          %v1274 = vpack.c.b16 %v1216, %v1214
          %v1275 = vpack.c.b16 %v1217, %v1215
          %v1276 = vpack.c.b16 %v1220, %v1218
          %v1277 = vpack.c.b16 %v1221, %v1219
          %v1278 = vpack.c.b16 %v1224, %v1222
          %v1279 = vpack.c.b16 %v1225, %v1223
          %v1280 = vpack.c.b16 %v1228, %v1226
          %v1281 = vpack.c.b16 %v1229, %v1227
          %v1282 = vpack.c.b16 %v1232, %v1230
          %v1283 = vpack.c.b16 %v1233, %v1231
          %v1284 = vpack.c.b16 %v1236, %v1234
          %v1285 = vpack.c.b16 %v1237, %v1235
          %v1286 = vpack.c.b16 %v1240, %v1238
          %v1287 = vpack.c.b16 %v1241, %v1239
          %v1288 = vpack.c.b16 %v1244, %v1242
          %v1289 = vpack.c.b16 %v1245, %v1243
          %v1290 = vpack.c.b16 %v1248, %v1246
          %v1291 = vpack.c.b16 %v1249, %v1247
          %v1292 = vpack.c.b16 %v1252, %v1250
          %v1293 = vpack.c.b16 %v1253, %v1251
          %v1294 = vpack.c.b16 %v1256, %v1254
          %v1295 = vpack.c.b16 %v1257, %v1255
          %v1296 = vpack.c.b16 %v1260, %v1258
          %v1297 = vpack.c.b16 %v1261, %v1259
          %v1298 = vpack.c.b16 %v1264, %v1262
          %v1299 = vpack.c.b16 %v1265, %v1263
          %v1300 = vpack.c.b16 %v1268, %v1266
          %v1301 = vpack.c.b16 %v1269, %v1267
          %1334 = vmatprep.subr.bf16.mxu0 %v1271
          %1335 = vmatpush1.bf16.msra.mxu0 %v1270
          %1336 = vmatprep.subr.bf16.mxu0 %v1273
          %1337 = vmatpush1.bf16.msra.mxu0 %v1272
          %1338 = vmatprep.subr.bf16.mxu0 %v1275
          %1339 = vmatpush1.bf16.msra.mxu0 %v1274
          %1340 = vmatprep.subr.bf16.mxu0 %v1277
          %1341 = vmatpush1.bf16.msra.mxu0 %v1276
          %1342 = vmatprep.subr.bf16.mxu0 %v1279
          %1343 = vmatpush1.bf16.msra.mxu0 %v1278
          %1344 = vmatprep.subr.bf16.mxu0 %v1281
          %1345 = vmatpush1.bf16.msra.mxu0 %v1280
          %1346 = vmatprep.subr.bf16.mxu0 %v1283
          %1347 = vmatpush1.bf16.msra.mxu0 %v1282
          %1348 = vmatprep.subr.bf16.mxu0 %v1285
          %1349 = vmatpush1.bf16.msra.mxu0 %v1284
          %1350 = vmatprep.subr.bf16.mxu0 %v1287
          %1351 = vmatpush1.bf16.msra.mxu0 %v1286
          %1352 = vmatprep.subr.bf16.mxu0 %v1289
          %1353 = vmatpush1.bf16.msra.mxu0 %v1288
          %1354 = vmatprep.subr.bf16.mxu0 %v1291
          %1355 = vmatpush1.bf16.msra.mxu0 %v1290
          %1356 = vmatprep.subr.bf16.mxu0 %v1293
          %1357 = vmatpush1.bf16.msra.mxu0 %v1292
          %1358 = vmatprep.subr.bf16.mxu0 %v1295
          %1359 = vmatpush1.bf16.msra.mxu0 %v1294
          %1360 = vmatprep.subr.bf16.mxu0 %v1297
          %1361 = vmatpush1.bf16.msra.mxu0 %v1296
          %1362 = vmatprep.subr.bf16.mxu0 %v1299
          %1363 = vmatpush1.bf16.msra.mxu0 %v1298
          %1364 = vmatprep.subr.bf16.mxu0 %v1301
          %1365 = vmatpush1.bf16.msra.mxu0 %v1300
          %1366 = vmatprep.mubr.bf16.mxu0 %v1123
          %1367 = vmatmul.mubr.bf16.gmra.mrb[0].mxu0 %v1122
          %v1368 = vpop.f32.mrb[0].mxu0
          %v1369 = vadd.f32 %v1167, %v1368
          %v1370 = vpop.f32.mrb[0].mxu0
          %v1371 = vadd.f32 %v1171, %v1370
          %v1372 = vpop.f32.mrb[0].mxu0
          %v1373 = vadd.f32 %v1167, %v1372
          %v1374 = vpop.f32.mrb[0].mxu0
          %v1375 = vadd.f32 %v1171, %v1374
          %1376 = vmatprep.mubr.bf16.mxu0 %v1125
          %1377 = vmatmul.mubr.bf16.gmra.mrb[0].mxu0 %v1124
          %v1378 = vpop.f32.mrb[0].mxu0
          %v1379 = vadd.f32 %v1167, %v1378
          %v1380 = vpop.f32.mrb[0].mxu0
          %v1381 = vadd.f32 %v1171, %v1380
          %v1382 = vpop.f32.mrb[0].mxu0
          %v1383 = vadd.f32 %v1167, %v1382
          %v1384 = vpop.f32.mrb[0].mxu0
          %v1385 = vadd.f32 %v1171, %v1384
          %1386 = vmatprep.mubr.bf16.mxu0 %v1127
          %1387 = vmatmul.mubr.bf16.gmra.mrb[0].mxu0 %v1126
          %v1388 = vpop.f32.mrb[0].mxu0
          %v1389 = vadd.f32 %v1167, %v1388
          %v1390 = vpop.f32.mrb[0].mxu0
          %v1391 = vadd.f32 %v1171, %v1390
          %v1392 = vpop.f32.mrb[0].mxu0
          %v1393 = vadd.f32 %v1167, %v1392
          %v1394 = vpop.f32.mrb[0].mxu0
          %v1395 = vadd.f32 %v1171, %v1394
          %1396 = vmatprep.mubr.bf16.mxu0 %v1129
          %1397 = vmatmul.mubr.bf16.gmra.mrb[0].mxu0 %v1128
          %v1398 = vpop.f32.mrb[0].mxu0
          %v1399 = vadd.f32 %v1167, %v1398
          %v1400 = vpop.f32.mrb[0].mxu0
          %v1401 = vadd.f32 %v1171, %v1400
          %v1402 = vpop.f32.mrb[0].mxu0
          %v1403 = vadd.f32 %v1167, %v1402
          %v1404 = vpop.f32.mrb[0].mxu0
          %v1405 = vadd.f32 %v1171, %v1404
          %1406 = vdwg.mxu0
          %v1407 = vpack.c.bf16 %v1373, %v1369
          %v1408 = vpack.c.bf16 %v1375, %v1371
          %v1409 = vpack.c.bf16 %v1383, %v1379
          %v1410 = vpack.c.bf16 %v1385, %v1381
          %v1411 = vpack.c.bf16 %v1393, %v1389
          %v1412 = vpack.c.bf16 %v1395, %v1391
          %v1413 = vpack.c.bf16 %v1403, %v1399
          %v1414 = vpack.c.bf16 %v1405, %v1401
          %v1415 = vld [vmem:[#allocation9] sm:$0xf]
          %v1416 = vld [vmem:[#allocation9 + $0x4] sm:$0xf]
          %v1417 = vld [vmem:[#allocation9 + $0x8] sm:$0xf]
          %v1418 = vld [vmem:[#allocation9 + $0xc] sm:$0xf]
          %v1419 = vld [vmem:[#allocation9 + $0x10] sm:$0xf]
          %v1420 = vld [vmem:[#allocation9 + $0x14] sm:$0xf]
          %v1421 = vld [vmem:[#allocation9 + $0x18] sm:$0xf]
          %v1422 = vld [vmem:[#allocation9 + $0x1c] sm:$0xf]
          %v1423 = vld [vmem:[#allocation9 + $0x20] sm:$0xf]
          %v1424 = vld [vmem:[#allocation9 + $0x24] sm:$0xf]
          %v1425 = vld [vmem:[#allocation9 + $0x28] sm:$0xf]
          %v1426 = vld [vmem:[#allocation9 + $0x2c] sm:$0xf]
          %v1427 = vld [vmem:[#allocation9 + $0x30] sm:$0xf]
          %v1428 = vld [vmem:[#allocation9 + $0x34] sm:$0xf]
          %v1429 = vld [vmem:[#allocation9 + $0x38] sm:$0xf]
          %v1430 = vld [vmem:[#allocation9 + $0x3c] sm:$0xf]
          %v1431 = vld [vmem:[#allocation9 + $0x40] sm:$0xf]
          %v1432 = vld [vmem:[#allocation9 + $0x44] sm:$0xf]
          %v1433 = vld [vmem:[#allocation9 + $0x48] sm:$0xf]
          %v1434 = vld [vmem:[#allocation9 + $0x4c] sm:$0xf]
          %v1435 = vld [vmem:[#allocation9 + $0x50] sm:$0xf]
          %v1436 = vld [vmem:[#allocation9 + $0x54] sm:$0xf]
          %v1437 = vld [vmem:[#allocation9 + $0x58] sm:$0xf]
          %v1438 = vld [vmem:[#allocation9 + $0x5c] sm:$0xf]
          %v1439 = vld [vmem:[#allocation9 + $0x60] sm:$0xf]
          %v1440 = vld [vmem:[#allocation9 + $0x64] sm:$0xf]
          %v1441 = vld [vmem:[#allocation9 + $0x68] sm:$0xf]
          %v1442 = vld [vmem:[#allocation9 + $0x6c] sm:$0xf]
          %v1443 = vld [vmem:[#allocation9 + $0x70] sm:$0xf]
          %v1444 = vld [vmem:[#allocation9 + $0x74] sm:$0xf]
          %v1445 = vld [vmem:[#allocation9 + $0x78] sm:$0xf]
          %v1446 = vld [vmem:[#allocation9 + $0x7c] sm:$0xf]
          %v1447 = vld [vmem:[%s6] sm:$0x1]
          %v1449 = vlaneseq
          %v1450 = vshrl.u32 %v1449, 7
          %v1451 = vsub.s32 0, %v1450
          %v1452 = vrot.slane %v1447, %v1451
          %v1486 = vunpack.c.l.b16 %v1415
          %v1487 = vunpack.c.l.b16 %v1416
          %v1488 = vunpack.c.l.b16 %v1417
          %v1489 = vunpack.c.l.b16 %v1418
          %v1490 = vunpack.c.l.b16 %v1419
          %v1491 = vunpack.c.l.b16 %v1420
          %v1492 = vunpack.c.l.b16 %v1421
          %v1493 = vunpack.c.l.b16 %v1422
          %v1494 = vunpack.c.l.b16 %v1423
          %v1495 = vunpack.c.l.b16 %v1424
          %v1496 = vunpack.c.l.b16 %v1425
          %v1497 = vunpack.c.l.b16 %v1426
          %v1498 = vunpack.c.l.b16 %v1427
          %v1499 = vunpack.c.l.b16 %v1428
          %v1500 = vunpack.c.l.b16 %v1429
          %v1501 = vunpack.c.l.b16 %v1430
          %v1502 = vunpack.c.l.b16 %v1431
          %v1503 = vunpack.c.l.b16 %v1432
          %v1504 = vunpack.c.l.b16 %v1433
          %v1505 = vunpack.c.l.b16 %v1434
          %v1506 = vunpack.c.l.b16 %v1435
          %v1507 = vunpack.c.l.b16 %v1436
          %v1508 = vunpack.c.l.b16 %v1437
          %v1509 = vunpack.c.l.b16 %v1438
          %v1510 = vunpack.c.l.b16 %v1439
          %v1511 = vunpack.c.l.b16 %v1440
          %v1512 = vunpack.c.l.b16 %v1441
          %v1513 = vunpack.c.l.b16 %v1442
          %v1514 = vunpack.c.l.b16 %v1443
          %v1515 = vunpack.c.l.b16 %v1444
          %v1516 = vunpack.c.l.b16 %v1445
          %v1517 = vunpack.c.l.b16 %v1446
          %v1518 = vpack.c.b16 %v1487, %v1486
          %v1519 = vpack.c.b16 %v1489, %v1488
          %v1520 = vpack.c.b16 %v1491, %v1490
          %v1521 = vpack.c.b16 %v1493, %v1492
          %v1522 = vpack.c.b16 %v1495, %v1494
          %v1523 = vpack.c.b16 %v1497, %v1496
          %v1524 = vpack.c.b16 %v1499, %v1498
          %v1525 = vpack.c.b16 %v1501, %v1500
          %v1526 = vpack.c.b16 %v1503, %v1502
          %v1527 = vpack.c.b16 %v1505, %v1504
          %v1528 = vpack.c.b16 %v1507, %v1506
          %v1529 = vpack.c.b16 %v1509, %v1508
          %v1530 = vpack.c.b16 %v1511, %v1510
          %v1531 = vpack.c.b16 %v1513, %v1512
          %v1532 = vpack.c.b16 %v1515, %v1514
          %v1533 = vpack.c.b16 %v1517, %v1516
          %1550 = vmatprep.subr.bf16.mxu0 0
          %1551 = vmatpush1.bf16.msra.mxu0 %v1518
          %1552 = vmatprep.subr.bf16.mxu0 0
          %1553 = vmatpush1.bf16.msra.mxu0 %v1519
          %1554 = vmatprep.subr.bf16.mxu0 0
          %1555 = vmatpush1.bf16.msra.mxu0 %v1520
          %1556 = vmatprep.subr.bf16.mxu0 0
          %1557 = vmatpush1.bf16.msra.mxu0 %v1521
          %1558 = vmatprep.subr.bf16.mxu0 0
          %1559 = vmatpush1.bf16.msra.mxu0 %v1522
          %1560 = vmatprep.subr.bf16.mxu0 0
          %1561 = vmatpush1.bf16.msra.mxu0 %v1523
          %1562 = vmatprep.subr.bf16.mxu0 0
          %1563 = vmatpush1.bf16.msra.mxu0 %v1524
          %1564 = vmatprep.subr.bf16.mxu0 0
          %1565 = vmatpush1.bf16.msra.mxu0 %v1525
          %1566 = vmatprep.subr.bf16.mxu0 0
          %1567 = vmatpush1.bf16.msra.mxu0 %v1526
          %1568 = vmatprep.subr.bf16.mxu0 0
          %1569 = vmatpush1.bf16.msra.mxu0 %v1527
          %1570 = vmatprep.subr.bf16.mxu0 0
          %1571 = vmatpush1.bf16.msra.mxu0 %v1528
          %1572 = vmatprep.subr.bf16.mxu0 0
          %1573 = vmatpush1.bf16.msra.mxu0 %v1529
          %1574 = vmatprep.subr.bf16.mxu0 0
          %1575 = vmatpush1.bf16.msra.mxu0 %v1530
          %1576 = vmatprep.subr.bf16.mxu0 0
          %1577 = vmatpush1.bf16.msra.mxu0 %v1531
          %1578 = vmatprep.subr.bf16.mxu0 0
          %1579 = vmatpush1.bf16.msra.mxu0 %v1532
          %1580 = vmatprep.subr.bf16.mxu0 0
          %1581 = vmatpush1.bf16.msra.mxu0 %v1533
          %1582 = vmatprep.mubr.bf16.mxu0 %v1408
          %1583 = vmatmul.mubr.bf16.gmra.mrb[0].mxu0 %v1407
          %v1584 = vpop.f32.mrb[0].mxu0
          %v1585 = vadd.f32 %v1452, %v1584
          %v1586 = vpop.f32.mrb[0].mxu0
          %v1587 = vpop.f32.mrb[0].mxu0
          %v1588 = vadd.f32 %v1452, %v1587
          %v1589 = vpop.f32.mrb[0].mxu0
          %1590 = vmatprep.mubr.bf16.mxu0 %v1410
          %1591 = vmatmul.mubr.bf16.gmra.mrb[0].mxu0 %v1409
          %v1592 = vpop.f32.mrb[0].mxu0
          %v1593 = vadd.f32 %v1452, %v1592
          %v1594 = vpop.f32.mrb[0].mxu0
          %v1595 = vpop.f32.mrb[0].mxu0
          %v1596 = vadd.f32 %v1452, %v1595
          %v1597 = vpop.f32.mrb[0].mxu0
          %1598 = vmatprep.mubr.bf16.mxu0 %v1412
          %1599 = vmatmul.mubr.bf16.gmra.mrb[0].mxu0 %v1411
          %v1600 = vpop.f32.mrb[0].mxu0
          %v1601 = vadd.f32 %v1452, %v1600
          %v1602 = vpop.f32.mrb[0].mxu0
          %v1603 = vpop.f32.mrb[0].mxu0
          %v1604 = vadd.f32 %v1452, %v1603
          %v1605 = vpop.f32.mrb[0].mxu0
          %1606 = vmatprep.mubr.bf16.mxu0 %v1414
          %1607 = vmatmul.mubr.bf16.gmra.mrb[0].mxu0 %v1413
          %v1608 = vpop.f32.mrb[0].mxu0
          %v1609 = vadd.f32 %v1452, %v1608
          %v1610 = vpop.f32.mrb[0].mxu0
          %v1611 = vpop.f32.mrb[0].mxu0
          %v1612 = vadd.f32 %v1452, %v1611
          %v1613 = vpop.f32.mrb[0].mxu0
          %1614 = vdwg.mxu0
          %1615 = vst [vmem:[%s414] sm:$0xff] %v1585
          %1616 = vst [vmem:[%s414 + $0x8] sm:$0xff] %v1588
          %1617 = vst [vmem:[%s414 + $0x10] sm:$0xff] %v1593
          %1618 = vst [vmem:[%s414 + $0x18] sm:$0xff] %v1596
          %1619 = vst [vmem:[%s414 + $0x20] sm:$0xff] %v1601
          %1620 = vst [vmem:[%s414 + $0x28] sm:$0xff] %v1604
          %1621 = vst [vmem:[%s414 + $0x30] sm:$0xff] %v1609
          %1622 = vst [vmem:[%s414 + $0x38] sm:$0xff] %v1612
          %v1623 = vmul.f32 %v1369, %v1369
          %v1624 = vmul.f32 %v1371, %v1371
          %v1625 = vmul.f32 %v1373, %v1373
          %v1626 = vmul.f32 %v1375, %v1375
          %v1627 = vmul.f32 %v1379, %v1379
          %v1628 = vmul.f32 %v1381, %v1381
          %v1629 = vmul.f32 %v1383, %v1383
          %v1630 = vmul.f32 %v1385, %v1385
          %v1631 = vmul.f32 %v1389, %v1389
          %v1632 = vmul.f32 %v1391, %v1391
          %v1633 = vmul.f32 %v1393, %v1393
          %v1634 = vmul.f32 %v1395, %v1395
          %v1635 = vmul.f32 %v1399, %v1399
          %v1636 = vmul.f32 %v1401, %v1401
          %v1637 = vmul.f32 %v1403, %v1403
          %v1638 = vmul.f32 %v1405, %v1405
          %v1639 = vadd.f32 %v1623, %v1624
          %1640 = vadd.xlane.f32.xlu0 %v1639
          %v1641 = vpop.xlane.xlu0 %1640
          %v1642 = vadd.f32 %v1625, %v1626
          %1643 = vadd.xlane.f32.xlu0 %v1642
          %v1644 = vpop.xlane.xlu0 %1643
          %v1645 = vadd.f32 %v1627, %v1628
          %1646 = vadd.xlane.f32.xlu0 %v1645
          %v1647 = vpop.xlane.xlu0 %1646
          %v1648 = vadd.f32 %v1629, %v1630
          %1649 = vadd.xlane.f32.xlu0 %v1648
          %v1650 = vpop.xlane.xlu0 %1649
          %v1651 = vadd.f32 %v1631, %v1632
          %1652 = vadd.xlane.f32.xlu0 %v1651
          %v1653 = vpop.xlane.xlu0 %1652
          %v1654 = vadd.f32 %v1633, %v1634
          %1655 = vadd.xlane.f32.xlu0 %v1654
          %v1656 = vpop.xlane.xlu0 %1655
          %v1657 = vadd.f32 %v1635, %v1636
          %1658 = vadd.xlane.f32.xlu0 %v1657
          %v1659 = vpop.xlane.xlu0 %1658
          %v1660 = vadd.f32 %v1637, %v1638
          %1661 = vadd.xlane.f32.xlu0 %v1660
          %v1662 = vpop.xlane.xlu0 %1661
          %v1663 = vmax.f32 %v1641, 1e-24
          %v1664 = vmax.f32 %v1644, 1e-24
          %v1665 = vmax.f32 %v1647, 1e-24
          %v1666 = vmax.f32 %v1650, 1e-24
          %v1667 = vmax.f32 %v1653, 1e-24
          %v1668 = vmax.f32 %v1656, 1e-24
          %v1669 = vmax.f32 %v1659, 1e-24
          %v1670 = vmax.f32 %v1662, 1e-24
          %v1671 = vrsqrt.pop %v1663
          %v1672 = vrsqrt.pop %v1664
          %v1673 = vrsqrt.pop %v1665
          %v1674 = vrsqrt.pop %v1666
          %v1675 = vrsqrt.pop %v1667
          %v1676 = vrsqrt.pop %v1668
          %v1677 = vrsqrt.pop %v1669
          %v1678 = vrsqrt.pop %v1670
          %v1679 = vmul.f32 %v1369, %v1671
          %v1680 = vmul.f32 %v1371, %v1671
          %v1681 = vmul.f32 %v1373, %v1672
          %v1682 = vmul.f32 %v1375, %v1672
          %v1683 = vmul.f32 %v1379, %v1673
          %v1684 = vmul.f32 %v1381, %v1673
          %v1685 = vmul.f32 %v1383, %v1674
          %v1686 = vmul.f32 %v1385, %v1674
          %v1687 = vmul.f32 %v1389, %v1675
          %v1688 = vmul.f32 %v1391, %v1675
          %v1689 = vmul.f32 %v1393, %v1676
          %v1690 = vmul.f32 %v1395, %v1676
          %v1691 = vmul.f32 %v1399, %v1677
          %v1692 = vmul.f32 %v1401, %v1677
          %v1693 = vmul.f32 %v1403, %v1678
          %v1694 = vmul.f32 %v1405, %v1678
          %1695 = vst [vmem:[%s421] sm:$0xff] %v1679
          %1696 = vst [vmem:[%s421 + $0x8] sm:$0xff] %v1680
          %1697 = vst [vmem:[%s421 + $0x10] sm:$0xff] %v1681
          %1698 = vst [vmem:[%s421 + $0x18] sm:$0xff] %v1682
          %1699 = vst [vmem:[%s421 + $0x20] sm:$0xff] %v1683
          %1700 = vst [vmem:[%s421 + $0x28] sm:$0xff] %v1684
          %1701 = vst [vmem:[%s421 + $0x30] sm:$0xff] %v1685
          %1702 = vst [vmem:[%s421 + $0x38] sm:$0xff] %v1686
          %1703 = vst [vmem:[%s421 + $0x40] sm:$0xff] %v1687
          %1704 = vst [vmem:[%s421 + $0x48] sm:$0xff] %v1688
          %1705 = vst [vmem:[%s421 + $0x50] sm:$0xff] %v1689
          %1706 = vst [vmem:[%s421 + $0x58] sm:$0xff] %v1690
          %1707 = vst [vmem:[%s421 + $0x60] sm:$0xff] %v1691
          %1708 = vst [vmem:[%s421 + $0x68] sm:$0xff] %v1692
          %1709 = vst [vmem:[%s421 + $0x70] sm:$0xff] %v1693
          %1710 = vst [vmem:[%s421 + $0x78] sm:$0xff] %v1694
        $region72: #{tpu_custom_call.1} parent=47 // pred_fallthru
          _
        %s1711 = sand.u32 %s212, 1
        %s1712 = scalar_lea.sflag [#allocation5], %s1711
        %s1713 = sand.u32 %s212, 1
        %s1714 = smul.addr %s1713, 64
        %s1715 = scalar_lea.vmem [#allocation11], %s1714
        %s1716 = sand.u32 %s238, 1
        %s1717 = scalar_lea.sflag [#allocation13], %s1716
        %s1718 = sand.u32 %s238, 1
        %s1719 = smul.addr %s1718, 128
        %s1720 = scalar_lea.vmem [#allocation12], %s1719
        // Predicated region
        $region73: #{tpu_custom_call.1} parent=47 // pred_check
          %p1721 = pneg %p222
        $region74: #{tpu_custom_call.1} parent=47 // pred_check_branch
          %1723 = sbr.rel (%p1721) target = $region76
        $region75: #{tpu_custom_call.1} parent=47 // pred_region
          %s1724 = smul.u32 8, %s37
          %s1726 = ssub.s32 1024, 1024
          %1727 = vsyncadd %s1712, %s1726
          %s1728 = smul.addr %s1724, 128
          %s1729 = scalar_lea.hbm %s7, %s1728
          %s1730 = sshll.u32 %s1715, 4
          %s1731 = int_to_ptr.vmem [resolvable:$true] %s1730
          %1736 = dma.vmem_to_hbm [thread:$0]  %s1731, 1024, %s1729, %s1712, 128, 128, 8
        $region76: #{tpu_custom_call.1} parent=47 // pred_fallthru
          _
        // Predicated region
        $region77: #{tpu_custom_call.1} parent=47 // pred_check
          %p1737 = pneg %p248
        $region78: #{tpu_custom_call.1} parent=47 // pred_check_branch
          %1739 = sbr.rel (%p1737) target = $region80
        $region79: #{tpu_custom_call.1} parent=47 // pred_region
          %s1740 = smul.u32 8, %s37
          %s1742 = ssub.s32 2048, 2048
          %1743 = vsyncadd %s1717, %s1742
          %s1744 = smul.addr %s1740, 2
          %s1745 = smul.addr %s1744, 128
          %s1746 = scalar_lea.hbm %s8, %s1745
          %s1747 = sshll.u32 %s1720, 4
          %s1748 = int_to_ptr.vmem [resolvable:$true] %s1747
          %1753 = dma.vmem_to_hbm [thread:$0]  %s1748, 2048, %s1746, %s1717, 256, 256, 16
        $region80: #{tpu_custom_call.1} parent=47 // pred_fallthru
          _
      $region48: #{tpu_custom_call.1} parent=5 // pred_fallthru
        _
      %p1754 = scmp.le.s32.totalorder 2, %s28
      // Predicated region
      $region81: #{tpu_custom_call.1} parent=5 // pred_check
        %p1755 = pneg %p1754
      $region82: #{tpu_custom_call.1} parent=5 // pred_check_branch
        %1757 = sbr.rel (%p1755) target = $region84
      $region83: #{tpu_custom_call.1} parent=5 // pred_region
        %s1758 = ssub.s32 %s28, 2
        // Predicated region
        $region85: #{tpu_custom_call.1} parent=83 // pred_check
          %p1759 = pneg %p228
        $region86: #{tpu_custom_call.1} parent=83 // pred_check_branch
          %1761 = sbr.rel (%p1759) target = $region88
        $region87: #{tpu_custom_call.1} parent=83 // pred_region
          %s1762 = sand.u32 %s213, 1
          %s1763 = scalar_lea.sflag [#allocation5], %s1762
          %s1764 = sand.u32 %s213, 1
          %s1765 = smul.addr %s1764, 64
          %s1766 = scalar_lea.vmem [#allocation11], %s1765
          %1767 = dma.done %s1763, 1024
        $region88: #{tpu_custom_call.1} parent=83 // pred_fallthru
          _
        // Predicated region
        $region89: #{tpu_custom_call.1} parent=83 // pred_check
          %p1768 = pneg %p254
        $region90: #{tpu_custom_call.1} parent=83 // pred_check_branch
          %1770 = sbr.rel (%p1768) target = $region92
        $region91: #{tpu_custom_call.1} parent=83 // pred_region
          %s1771 = sand.u32 %s239, 1
          %s1772 = scalar_lea.sflag [#allocation13], %s1771
          %s1773 = sand.u32 %s239, 1
          %s1774 = smul.addr %s1773, 128
          %s1775 = scalar_lea.vmem [#allocation12], %s1774
          %1776 = dma.done %s1772, 2048
        $region92: #{tpu_custom_call.1} parent=83 // pred_fallthru
          _
      $region84: #{tpu_custom_call.1} parent=5 // pred_fallthru
        _
    $region6: #{tpu_custom_call.1} parent=1 // loop_footer
      %s32 = sadd.s32 1, %s28
    $region7: #{tpu_custom_call.1} parent=1 // loop_footer_branch
      %27 = sbr.rel target = $region3
    $region8: #{tpu_custom_call.1} parent=1 // loop_exit
      _
    %1777 = vsyncpa [#allocation4], 1
    %s1778 = scalar_lea.sflag [#allocation4], 1
    %1779 = vsyncpa %s1778, 1
    %1780 = vsyncpa [#allocation7], 1
    %s1781 = scalar_lea.sflag [#allocation7], 1
    %1782 = vsyncpa %s1781, 1
    %1783 = vsyncpa [#allocation10], 1
    %1784 = vsyncpa [#allocation5], 1
    %s1785 = scalar_lea.sflag [#allocation5], 1
    %1786 = vsyncpa %s1785, 1
    %1787 = vsyncpa [#allocation13], 1
    %s1788 = scalar_lea.sflag [#allocation13], 1
    %1789 = vsyncpa %s1788, 1

</llo_original>
